<compile_context>
chip_gen: v7x
topology: tpu7x:2x2x1
jax: 0.10.0
libtpu: 0.0.40
codegen_flags: <defaults>
</compile_context>

<pallas_src>
import functools

import jax
import jax.numpy as jnp
from jax.experimental import pallas as pl
from jax.experimental.pallas import tpu as pltpu

_LANE = 128
_MIB = 1024 * 1024


def _vmem_budget_bytes():
    """Scoped-VMEM budget: generous on v5e/v6e (128 MiB physical), conservative on v7x (64 MiB)."""
    try:
        phys = pltpu.get_tpu_info().vmem_capacity_bytes
    except Exception:
        phys = 64 * _MIB
    return int(min(phys - 16 * _MIB, 64 * _MIB))


def _pick_tiles(n, out_itemsize, p_buf_bytes, vmem_budget):
    """Largest (tm, tk) pair whose double-buffered footprint fits the VMEM budget."""
    tm_cands = [t for t in (1024, 512, 256, 128) if n % t == 0]
    tk_cands = [t for t in (2048, 1024, 512, 256, 128) if n % t == 0]
    # Keep >= 2 row tiles when possible so dimension_semantics=("parallel", ...) can
    # shard the row axis across v7x's two TensorCores.
    mc = [t for t in tm_cands if n // t >= 2]
    if mc:
        tm_cands = mc
    best = (tm_cands[-1], tk_cands[-1])
    best_area = 0
    for tm in tm_cands:
        for tk in tk_cands:
            a_buf = 2 * tm * tk * 2                  # double-buffered bf16 A tile
            o_buf = 2 * tm * _LANE * out_itemsize    # double-buffered, lane-padded out tile
            acc = tm * _LANE * 4                     # f32 accumulator scratch (lane-padded)
            total = a_buf + p_buf_bytes + o_buf + acc + 1 * _MIB   # slack for W/b/internal
            if total <= vmem_budget and tm * tk > best_area:
                best, best_area = (tm, tk), tm * tk
    return best


def _make_gcn_layer_kernel(epilogue, p_resident, tk):
    """Tiled A_hat @ P reduction with a fused per-layer epilogue.

    grid = (N//tm, N//tk); axis 0 = independent row tiles ("parallel"),
    axis 1 = reduction over A_hat columns ("arbitrary").
    """

    def kernel(a_ref, p_ref, w_ref, b_ref, o_ref, acc_ref):
        k = pl.program_id(1)

        @pl.when(k == 0)
        def _():
            acc_ref[...] = jnp.zeros_like(acc_ref)

        if p_resident:
            # P lives fully in VMEM; slice the current reduction chunk (tk-aligned start).
            p_tile = p_ref[pl.ds(pl.multiple_of(k * tk, tk), tk), :]
        else:
            p_tile = p_ref[...]

        # bf16 x bf16 -> f32 accumulate on the MXU (dominant O(N^2 * F) work).
        acc_ref[...] += jnp.dot(a_ref[...], p_tile, preferred_element_type=jnp.float32)

        @pl.when(k == pl.num_programs(1) - 1)
        def _():
            # Tiny projection + bias + nonlinearity in f32 (v5e has no bf16 VPU/EUP).
            z = jnp.dot(
                acc_ref[...], w_ref[...], preferred_element_type=jnp.float32
            ) + b_ref[...]
            if epilogue == "relu":
                o_ref[...] = jnp.maximum(z, 0.0).astype(o_ref.dtype)
            else:  # log_softmax over dim=1 (classes)
                m = jnp.max(z, axis=-1, keepdims=True)
                s = z - m
                lse = jnp.log(jnp.sum(jnp.exp(s), axis=-1, keepdims=True))
                o_ref[...] = (s - lse).astype(o_ref.dtype)

    return kernel


def gcn_layer(a_hat, p, w, b, *, epilogue, out_dtype):
    """o = epilogue((A_hat @ p) @ w + b), with A_hat @ p tiled over the grid."""
    n = a_hat.shape[0]
    assert n % _LANE == 0, "gcn_layer expects the node dim padded to a multiple of 128"
    f_in = p.shape[1]
    f_out = w.shape[1]
    out_itemsize = jnp.dtype(out_dtype).itemsize
    p_itemsize = p.dtype.itemsize

    vmem_budget = _vmem_budget_bytes()

    # Keep the narrow operand P resident in VMEM when small (fetched once instead of being
    # re-streamed for every row tile); otherwise stream (tk, f_in) blocks.
    p_resident_bytes = 2 * n * _LANE * p_itemsize          # lane-padded, double-buffered bound
    p_resident = p_resident_bytes <= 4 * _MIB
    p_buf_bytes = p_resident_bytes if p_resident else 2 * 2048 * _LANE * p_itemsize

    tm, tk = _pick_tiles(n, out_itemsize, p_buf_bytes, vmem_budget)
    grid = (n // tm, n // tk)

    if p_resident:
        p_spec = pl.BlockSpec((n, f_in), lambda i, k: (0, 0))          # resident in VMEM
    else:
        p_spec = pl.BlockSpec((tk, f_in), lambda i, k: (k, 0))         # streamed per step

    cost = pl.CostEstimate(
        flops=2 * n * n * f_in + 2 * n * f_in * f_out,
        transcendentals=n * f_out if epilogue == "log_softmax" else 0,
        bytes_accessed=(
            n * n * a_hat.dtype.itemsize
            + n * f_in * p_itemsize
            + n * f_out * out_itemsize
        ),
    )

    return pl.pallas_call(
        _make_gcn_layer_kernel(epilogue, p_resident, tk),
        out_shape=jax.ShapeDtypeStruct((n, f_out), out_dtype),
        grid_spec=pltpu.PrefetchScalarGridSpec(
            num_scalar_prefetch=0,
            grid=grid,
            in_specs=[
                pl.BlockSpec((tm, tk), lambda i, k: (i, k)),             # A_hat tile
                p_spec,                                                   # narrow operand
                pl.BlockSpec((w.shape[0], f_out), lambda i, k: (0, 0)),   # W (resident)
                pl.BlockSpec((1, f_out), lambda i, k: (0, 0)),            # bias (resident)
            ],
            out_specs=pl.BlockSpec((tm, f_out), lambda i, k: (i, 0)),
            scratch_shapes=[pltpu.VMEM((tm, f_in), jnp.float32)],
        ),
        compiler_params=pltpu.CompilerParams(
            dimension_semantics=("parallel", "arbitrary"),
            vmem_limit_bytes=vmem_budget,
        ),
        cost_estimate=cost,
    )(a_hat, p, w, b)


def prepare_gcn_operands(a_hat, x):
    """One-time padding (node dim -> multiple of 128) and bf16 cast of the HBM-bound dense
    operands, hoisted out of the per-forward path (reused across calls and both layers)."""
    n = x.shape[0]
    n_pad = ((n + _LANE - 1) // _LANE) * _LANE
    a_p = jnp.zeros((n_pad, n_pad), jnp.bfloat16).at[:n, :n].set(a_hat.astype(jnp.bfloat16))
    x_p = jnp.zeros((n_pad, x.shape[1]), jnp.bfloat16).at[:n, :].set(x.astype(jnp.bfloat16))
    return a_p, x_p


@functools.partial(jax.jit, static_argnames=("num_valid",))
def gcn_forward(a_pad, x_pad, w1, b1, w2, b2, *, num_valid):
    """2-layer GCN forward matching the PyTorch module (on pre-padded bf16 operands)."""
    # Layer 1: relu((A @ X) @ W1 + b1)  (== relu(A @ (X @ W1) + b1) by associativity;
    # this order multiplies A by the narrower operand, F=8 < hidden=16).
    h = gcn_layer(a_pad, x_pad, w1, b1, epilogue="relu", out_dtype=jnp.bfloat16)
    # Layer 2: log_softmax((A @ H) @ W2 + b2)
    z = gcn_layer(a_pad, h, w2, b2, epilogue="log_softmax", out_dtype=jnp.float32)
    return z[:num_valid]


def build_normalized_adjacency(edge_index, num_nodes):
    """Dense A_hat = D^{-1/2} (A + self-loops) D^{-1/2}, matching PyG GCNConv defaults
    (gcn_norm with add_remaining_self_loops: only nodes lacking a self-loop get a unit one)."""
    src = edge_index[0]
    dst = edge_index[1]
    a = jnp.zeros((num_nodes, num_nodes), jnp.float32).at[dst, src].add(1.0)  # src -> dst
    idx = jnp.arange(num_nodes)
    diag = jnp.diagonal(a)
    a = a.at[idx, idx].set(jnp.where(diag > 0.0, diag, 1.0))                  # remaining self-loops
    deg = jnp.sum(a, axis=1)
    d_inv_sqrt = jnp.where(deg > 0, 1.0 / jnp.sqrt(deg), 0.0)
    return d_inv_sqrt[:, None] * a * d_inv_sqrt[None, :]


def init_params(key, num_features, hidden, num_classes):
    k1, k2 = jax.random.split(key)
    lim1 = jnp.sqrt(6.0 / (num_features + hidden))
    lim2 = jnp.sqrt(6.0 / (hidden + num_classes))
    w1 = jax.random.uniform(k1, (num_features, hidden), jnp.float32, -lim1, lim1)
    w2 = jax.random.uniform(k2, (hidden, num_classes), jnp.float32, -lim2, lim2)
    b1 = jnp.zeros((1, hidden), jnp.float32)
    b2 = jnp.zeros((1, num_classes), jnp.float32)
    return w1, b1, w2, b2


def gcn_reference(a_hat, x, w1, b1, w2, b2):
    h = jnp.maximum(jnp.dot(a_hat, jnp.dot(x, w1)) + b1, 0.0)
    z = jnp.dot(a_hat, jnp.dot(h, w2)) + b2
    return jax.nn.log_softmax(z, axis=1)


if __name__ == "__main__":
    key = jax.random.PRNGKey(0)
    num_nodes = 16
    num_features = 8
    hidden = 16          # GCNConv(num_features, 16)
    num_classes = 4
    num_edges = 32

    k_x, k_e, k_p = jax.random.split(key, 3)
    x = jax.random.normal(k_x, (num_nodes, num_features), jnp.float32)
    edge_index = jax.random.randint(k_e, (2, num_edges), 0, num_nodes, jnp.int32)

    w1, b1, w2, b2 = init_params(k_p, num_features, hidden, num_classes)
    a_hat = build_normalized_adjacency(edge_index, num_nodes)

    # One-time prep (pad + bf16 cast) kept out of the per-forward path.
    a_pad, x_pad = jax.block_until_ready(prepare_gcn_operands(a_hat, x))

    out = gcn_forward(a_pad, x_pad, w1, b1, w2, b2, num_valid=num_nodes)
    out = jax.block_until_ready(out)

    # correctness checks
    assert out.shape == (num_nodes, num_classes)
    row_sums = jnp.sum(jnp.exp(out), axis=1)
    assert jnp.allclose(row_sums, 1.0, atol=1e-4)            # valid log-softmax rows
    ref = gcn_reference(a_hat, x, w1, b1, w2, b2)
    assert jnp.allclose(out, ref, atol=0.1, rtol=0.1)        # bf16-A tolerance

    print("KERNEL_OK")
</pallas_src>

<mosaic_0001>
module attributes {stable_mosaic.version = 11 : i64} {
  func.func @kernel(%arg0: i32, %arg1: i32, %arg2: memref<128x128xbf16, #tpu.memory_space<vmem>>, %arg3: memref<128x16xbf16, #tpu.memory_space<vmem>>, %arg4: memref<16x4xf32, #tpu.memory_space<vmem>>, %arg5: memref<1x4xf32, #tpu.memory_space<vmem>>, %arg6: memref<128x4xf32, #tpu.memory_space<vmem>>, %arg7: memref<128x16xf32, #tpu.memory_space<vmem>>) attributes {dimension_semantics = [#tpu.dimension_semantics<parallel>, #tpu.dimension_semantics<arbitrary>], iteration_bounds = array<i64: 1, 1>, scalar_prefetch = 0 : i64, scratch_operands = 1 : i64, tpu.core_type = #tpu.core_type<tc>, window_params = [{transform_indices = @transform_0, window_bounds = array<i64: 128, 128>}, {pipeline_mode = #tpu.pipeline_mode<synchronous>, transform_indices = @transform_1, window_bounds = array<i64: 128, 16>}, {pipeline_mode = #tpu.pipeline_mode<synchronous>, transform_indices = @transform_2, window_bounds = array<i64: 16, 4>}, {pipeline_mode = #tpu.pipeline_mode<synchronous>, transform_indices = @transform_3, window_bounds = array<i64: 1, 4>}, {transform_indices = @transform_4, window_bounds = array<i64: 128, 4>}]} {
    %c0_i32 = arith.constant 0 : i32
    %0 = arith.cmpi eq, %arg1, %c0_i32 : i32
    %1 = arith.extui %0 : i1 to i32
    %c0_i32_0 = arith.constant 0 : i32
    %2 = arith.cmpi ne, %1, %c0_i32_0 : i32
    scf.if %2 {
      %cst_9 = arith.constant 0.000000e+00 : f32
      %15 = vector.broadcast %cst_9 : f32 to vector<128x16xf32>
      %c0_10 = arith.constant 0 : index
      %c0_11 = arith.constant 0 : index
      %16 = vector.load %arg7[%c0_10, %c0_11] : memref<128x16xf32, #tpu.memory_space<vmem>>, vector<128x16xf32>
      tpu.vector_store %arg7[%c0_10, %c0_11], %15 {strides = array<i32>} : memref<128x16xf32, #tpu.memory_space<vmem>>, vector<128x16xf32>,
    } else {
    }
    %c128_i32 = arith.constant 128 : i32
    %3 = arith.muli %arg1, %c128_i32 : i32
    %4 = tpu.assume_multiple %3, 128 : i32
    %5 = arith.index_cast %4 : i32 to index
    %c0 = arith.constant 0 : index
    %6 = vector.load %arg3[%5, %c0] : memref<128x16xbf16, #tpu.memory_space<vmem>>, vector<128x16xbf16>
    %c0_1 = arith.constant 0 : index
    %c0_2 = arith.constant 0 : index
    %7 = vector.load %arg7[%c0_1, %c0_2] : memref<128x16xf32, #tpu.memory_space<vmem>>, vector<128x16xf32>
    %c0_3 = arith.constant 0 : index
    %c0_4 = arith.constant 0 : index
    %8 = vector.load %arg2[%c0_3, %c0_4] : memref<128x128xbf16, #tpu.memory_space<vmem>>, vector<128x128xbf16>
    %cst = arith.constant dense<0.000000e+00> : vector<128x16xf32>
    %9 = tpu.matmul %8, %6, %cst {dimension_numbers = #tpu.dot_dimension_numbers<[1], [0], [0], [1], [0, 0, 1, 1], [], []>} : vector<128x128xbf16>, vector<128x16xbf16>, vector<128x16xf32> -> vector<128x16xf32>
    %10 = arith.addf %7, %9 : vector<128x16xf32>
    %c0_5 = arith.constant 0 : index
    %c0_6 = arith.constant 0 : index
    %11 = vector.load %arg7[%c0_5, %c0_6] : memref<128x16xf32, #tpu.memory_space<vmem>>, vector<128x16xf32>
    tpu.vector_store %arg7[%c0_5, %c0_6], %10 {strides = array<i32>} : memref<128x16xf32, #tpu.memory_space<vmem>>, vector<128x16xf32>,
    %c0_i32_7 = arith.constant 0 : i32
    %12 = arith.cmpi eq, %arg1, %c0_i32_7 : i32
    %13 = arith.extui %12 : i1 to i32
    %c0_i32_8 = arith.constant 0 : i32
    %14 = arith.cmpi ne, %13, %c0_i32_8 : i32
    scf.if %14 {
      %c0_9 = arith.constant 0 : index
      %c0_10 = arith.constant 0 : index
      %15 = vector.load %arg7[%c0_9, %c0_10] : memref<128x16xf32, #tpu.memory_space<vmem>>, vector<128x16xf32>
      %c0_11 = arith.constant 0 : index
      %c0_12 = arith.constant 0 : index
      %16 = vector.load %arg4[%c0_11, %c0_12] : memref<16x4xf32, #tpu.memory_space<vmem>>, vector<16x4xf32>
      %cst_13 = arith.constant dense<0.000000e+00> : vector<128x4xf32>
      %17 = tpu.matmul %15, %16, %cst_13 {dimension_numbers = #tpu.dot_dimension_numbers<[1], [0], [0], [1], [0, 0, 1, 1], [], []>} : vector<128x16xf32>, vector<16x4xf32>, vector<128x4xf32> -> vector<128x4xf32>
      %c0_14 = arith.constant 0 : index
      %c0_15 = arith.constant 0 : index
      %18 = vector.load %arg5[%c0_14, %c0_15] : memref<1x4xf32, #tpu.memory_space<vmem>>, vector<1x4xf32>
      %19 = vector.broadcast %18 : vector<1x4xf32> to vector<128x4xf32>
      %20 = arith.addf %17, %19 : vector<128x4xf32>
      %cst_16 = arith.constant dense<0xFF800000> : vector<128xf32>
      %21 = vector.multi_reduction <maximumf>, %20, %cst_16 [1] : vector<128x4xf32> to vector<128xf32>
      %22 = vector.shape_cast %21 : vector<128xf32> to vector<128x1xf32>
      %23 = vector.broadcast %22 : vector<128x1xf32> to vector<128x4xf32>
      %24 = arith.subf %20, %23 : vector<128x4xf32>
      %25 = math.exp %24 : vector<128x4xf32>
      %cst_17 = arith.constant dense<0.000000e+00> : vector<128xf32>
      %26 = vector.multi_reduction <add>, %25, %cst_17 [1] : vector<128x4xf32> to vector<128xf32>
      %27 = vector.shape_cast %26 : vector<128xf32> to vector<128x1xf32>
      %28 = math.log %27 : vector<128x1xf32>
      %29 = vector.broadcast %28 : vector<128x1xf32> to vector<128x4xf32>
      %30 = arith.subf %24, %29 : vector<128x4xf32>
      %c0_18 = arith.constant 0 : index
      %c0_19 = arith.constant 0 : index
      %31 = vector.load %arg6[%c0_18, %c0_19] : memref<128x4xf32, #tpu.memory_space<vmem>>, vector<128x4xf32>
      tpu.vector_store %arg6[%c0_18, %c0_19], %30 {strides = array<i32>} : memref<128x4xf32, #tpu.memory_space<vmem>>, vector<128x4xf32>,
    } else {
    }
    return
  }
  func.func @transform_0(%arg0: i32, %arg1: i32) -> (i32, i32) {
    %c0_i32 = arith.constant 0 : i32
    return %arg0, %arg1 : i32, i32
  }
  func.func @transform_1(%arg0: i32, %arg1: i32) -> (i32, i32) {
    %c0_i32 = arith.constant 0 : i32
    %c0_i32_0 = arith.constant 0 : i32
    %c0_i32_1 = arith.constant 0 : i32
    return %c0_i32, %c0_i32_0 : i32, i32
  }
  func.func @transform_2(%arg0: i32, %arg1: i32) -> (i32, i32) {
    %c0_i32 = arith.constant 0 : i32
    %c0_i32_0 = arith.constant 0 : i32
    %c0_i32_1 = arith.constant 0 : i32
    return %c0_i32, %c0_i32_0 : i32, i32
  }
  func.func @transform_3(%arg0: i32, %arg1: i32) -> (i32, i32) {
    %c0_i32 = arith.constant 0 : i32
    %c0_i32_0 = arith.constant 0 : i32
    %c0_i32_1 = arith.constant 0 : i32
    return %c0_i32, %c0_i32_0 : i32, i32
  }
  func.func @transform_4(%arg0: i32, %arg1: i32) -> (i32, i32) {
    %c0_i32 = arith.constant 0 : i32
    %c0_i32_0 = arith.constant 0 : i32
    return %arg0, %c0_i32 : i32, i32
  }
}

module attributes {stable_mosaic.version = 11 : i64} {
  func.func @kernel(%arg0: i32, %arg1: i32, %arg2: memref<128x128xbf16, #tpu.memory_space<vmem>>, %arg3: memref<128x8xbf16, #tpu.memory_space<vmem>>, %arg4: memref<8x16xf32, #tpu.memory_space<vmem>>, %arg5: memref<1x16xf32, #tpu.memory_space<vmem>>, %arg6: memref<128x16xbf16, #tpu.memory_space<vmem>>, %arg7: memref<128x8xf32, #tpu.memory_space<vmem>>) attributes {dimension_semantics = [#tpu.dimension_semantics<parallel>, #tpu.dimension_semantics<arbitrary>], iteration_bounds = array<i64: 1, 1>, scalar_prefetch = 0 : i64, scratch_operands = 1 : i64, tpu.core_type = #tpu.core_type<tc>, window_params = [{transform_indices = @transform_0, window_bounds = array<i64: 128, 128>}, {pipeline_mode = #tpu.pipeline_mode<synchronous>, transform_indices = @transform_1, window_bounds = array<i64: 128, 8>}, {pipeline_mode = #tpu.pipeline_mode<synchronous>, transform_indices = @transform_2, window_bounds = array<i64: 8, 16>}, {pipeline_mode = #tpu.pipeline_mode<synchronous>, transform_indices = @transform_3, window_bounds = array<i64: 1, 16>}, {transform_indices = @transform_4, window_bounds = array<i64: 128, 16>}]} {
    %c0_i32 = arith.constant 0 : i32
    %0 = arith.cmpi eq, %arg1, %c0_i32 : i32
    %1 = arith.extui %0 : i1 to i32
    %c0_i32_0 = arith.constant 0 : i32
    %2 = arith.cmpi ne, %1, %c0_i32_0 : i32
    scf.if %2 {
      %cst_9 = arith.constant 0.000000e+00 : f32
      %15 = vector.broadcast %cst_9 : f32 to vector<128x8xf32>
      %c0_10 = arith.constant 0 : index
      %c0_11 = arith.constant 0 : index
      %16 = vector.load %arg7[%c0_10, %c0_11] : memref<128x8xf32, #tpu.memory_space<vmem>>, vector<128x8xf32>
      tpu.vector_store %arg7[%c0_10, %c0_11], %15 {strides = array<i32>} : memref<128x8xf32, #tpu.memory_space<vmem>>, vector<128x8xf32>,
    } else {
    }
    %c128_i32 = arith.constant 128 : i32
    %3 = arith.muli %arg1, %c128_i32 : i32
    %4 = tpu.assume_multiple %3, 128 : i32
    %5 = arith.index_cast %4 : i32 to index
    %c0 = arith.constant 0 : index
    %6 = vector.load %arg3[%5, %c0] : memref<128x8xbf16, #tpu.memory_space<vmem>>, vector<128x8xbf16>
    %c0_1 = arith.constant 0 : index
    %c0_2 = arith.constant 0 : index
    %7 = vector.load %arg7[%c0_1, %c0_2] : memref<128x8xf32, #tpu.memory_space<vmem>>, vector<128x8xf32>
    %c0_3 = arith.constant 0 : index
    %c0_4 = arith.constant 0 : index
    %8 = vector.load %arg2[%c0_3, %c0_4] : memref<128x128xbf16, #tpu.memory_space<vmem>>, vector<128x128xbf16>
    %cst = arith.constant dense<0.000000e+00> : vector<128x8xf32>
    %9 = tpu.matmul %8, %6, %cst {dimension_numbers = #tpu.dot_dimension_numbers<[1], [0], [0], [1], [0, 0, 1, 1], [], []>} : vector<128x128xbf16>, vector<128x8xbf16>, vector<128x8xf32> -> vector<128x8xf32>
    %10 = arith.addf %7, %9 : vector<128x8xf32>
    %c0_5 = arith.constant 0 : index
    %c0_6 = arith.constant 0 : index
    %11 = vector.load %arg7[%c0_5, %c0_6] : memref<128x8xf32, #tpu.memory_space<vmem>>, vector<128x8xf32>
    tpu.vector_store %arg7[%c0_5, %c0_6], %10 {strides = array<i32>} : memref<128x8xf32, #tpu.memory_space<vmem>>, vector<128x8xf32>,
    %c0_i32_7 = arith.constant 0 : i32
    %12 = arith.cmpi eq, %arg1, %c0_i32_7 : i32
    %13 = arith.extui %12 : i1 to i32
    %c0_i32_8 = arith.constant 0 : i32
    %14 = arith.cmpi ne, %13, %c0_i32_8 : i32
    scf.if %14 {
      %c0_9 = arith.constant 0 : index
      %c0_10 = arith.constant 0 : index
      %15 = vector.load %arg7[%c0_9, %c0_10] : memref<128x8xf32, #tpu.memory_space<vmem>>, vector<128x8xf32>
      %c0_11 = arith.constant 0 : index
      %c0_12 = arith.constant 0 : index
      %16 = vector.load %arg4[%c0_11, %c0_12] : memref<8x16xf32, #tpu.memory_space<vmem>>, vector<8x16xf32>
      %cst_13 = arith.constant dense<0.000000e+00> : vector<128x16xf32>
      %17 = tpu.matmul %15, %16, %cst_13 {dimension_numbers = #tpu.dot_dimension_numbers<[1], [0], [0], [1], [0, 0, 1, 1], [], []>} : vector<128x8xf32>, vector<8x16xf32>, vector<128x16xf32> -> vector<128x16xf32>
      %c0_14 = arith.constant 0 : index
      %c0_15 = arith.constant 0 : index
      %18 = vector.load %arg5[%c0_14, %c0_15] : memref<1x16xf32, #tpu.memory_space<vmem>>, vector<1x16xf32>
      %19 = vector.broadcast %18 : vector<1x16xf32> to vector<128x16xf32>
      %20 = arith.addf %17, %19 : vector<128x16xf32>
      %cst_16 = arith.constant 0.000000e+00 : f32
      %21 = vector.broadcast %cst_16 : f32 to vector<128x16xf32>
      %22 = arith.maximumf %20, %21 : vector<128x16xf32>
      %23 = arith.truncf %22 : vector<128x16xf32> to vector<128x16xbf16>
      %c0_17 = arith.constant 0 : index
      %c0_18 = arith.constant 0 : index
      %24 = vector.load %arg6[%c0_17, %c0_18] : memref<128x16xbf16, #tpu.memory_space<vmem>>, vector<128x16xbf16>
      tpu.vector_store %arg6[%c0_17, %c0_18], %23 {strides = array<i32>} : memref<128x16xbf16, #tpu.memory_space<vmem>>, vector<128x16xbf16>,
    } else {
    }
    return
  }
  func.func @transform_0(%arg0: i32, %arg1: i32) -> (i32, i32) {
    %c0_i32 = arith.constant 0 : i32
    return %arg0, %arg1 : i32, i32
  }
  func.func @transform_1(%arg0: i32, %arg1: i32) -> (i32, i32) {
    %c0_i32 = arith.constant 0 : i32
    %c0_i32_0 = arith.constant 0 : i32
    %c0_i32_1 = arith.constant 0 : i32
    return %c0_i32, %c0_i32_0 : i32, i32
  }
  func.func @transform_2(%arg0: i32, %arg1: i32) -> (i32, i32) {
    %c0_i32 = arith.constant 0 : i32
    %c0_i32_0 = arith.constant 0 : i32
    %c0_i32_1 = arith.constant 0 : i32
    return %c0_i32, %c0_i32_0 : i32, i32
  }
  func.func @transform_3(%arg0: i32, %arg1: i32) -> (i32, i32) {
    %c0_i32 = arith.constant 0 : i32
    %c0_i32_0 = arith.constant 0 : i32
    %c0_i32_1 = arith.constant 0 : i32
    return %c0_i32, %c0_i32_0 : i32, i32
  }
  func.func @transform_4(%arg0: i32, %arg1: i32) -> (i32, i32) {
    %c0_i32 = arith.constant 0 : i32
    %c0_i32_0 = arith.constant 0 : i32
    return %arg0, %c0_i32 : i32, i32
  }
}

</mosaic_0001>

<llo_original>
// kernel: gcn_forward.3
$region0: #{gcn_forward.3}
  #allocation0 [shape = 'u32[]', space=smem, size = 0x4, offset = 0x4, fixed_abs, tag = 'smem constant byte address 0x4 - core index']
  #allocation1 [shape = 'u32[144,128]{1,0:T(1,128)}', space=vmem, size = 0x12000, scoped, tag = 'internal scratch']
  #allocation2 [shape = 'f32[128,16]{1,0:T(8,128)}', space=vmem, size = 0x10000, scoped, tag = 'scratch operand']
  %s0 = inlined_call_operand.vmem [shape: bf16[128,128], index: 0, kind: input, shape index: {}]
  %s1 = inlined_call_operand.vmem [shape: bf16[128,16], index: 1, kind: input, shape index: {}]
  %s2 = inlined_call_operand.vmem [shape: f32[16,4], index: 2, kind: input, shape index: {}]
  %s3 = inlined_call_operand.vmem [shape: f32[1,4], index: 3, kind: input, shape index: {}]
  %s4 = inlined_call_operand.vmem [shape: f32[128,4], index: 4, kind: output, shape index: {}]
  %s5 = sld [smem:[#allocation0]]
  $region34: #{gcn_forward.3} parent=0
    _
  %s7 = ssub.s32 1, %s5
  %s8 = scalar_select 0, %s7, %s5
  // Predicated region
  $region2: #{gcn_forward.3} parent=0 // pred_check
    _
  $region3: #{gcn_forward.3} parent=0 // pred_check_branch
    %10 = sbr.rel (0) target = $region5
  $region4: #{gcn_forward.3} parent=0 // pred_region
    _
  $region5: #{gcn_forward.3} parent=0 // pred_fallthru
    _
  // Predicated region
  $region6: #{gcn_forward.3} parent=0 // pred_check
    _
  $region7: #{gcn_forward.3} parent=0 // pred_check_branch
    %12 = sbr.rel (0) target = $region9
  $region8: #{gcn_forward.3} parent=0 // pred_region
    _
  $region9: #{gcn_forward.3} parent=0 // pred_fallthru
    _
  // Predicated region
  $region10: #{gcn_forward.3} parent=0 // pred_check
    _
  $region11: #{gcn_forward.3} parent=0 // pred_check_branch
    %14 = sbr.rel (0) target = $region13
  $region12: #{gcn_forward.3} parent=0 // pred_region
    _
  $region13: #{gcn_forward.3} parent=0 // pred_fallthru
    _
  // Predicated region
  $region14: #{gcn_forward.3} parent=0 // pred_check
    _
  $region15: #{gcn_forward.3} parent=0 // pred_check_branch
    %16 = sbr.rel (0) target = $region17
  $region16: #{gcn_forward.3} parent=0 // pred_region
    _
  $region17: #{gcn_forward.3} parent=0 // pred_fallthru
    _
  %p18 = scmp.eq.s32.totalorder 0, 0
  // Predicated region
  $region18: #{gcn_forward.3} parent=0 // pred_check
    %p19 = pneg %p18
  $region19: #{gcn_forward.3} parent=0 // pred_check_branch
    %21 = sbr.rel (%p19) target = $region21
  $region20: #{gcn_forward.3} parent=0 // pred_region
    %vm22 = vcmask 130048
    %23 = vst.msk [vmem:[#allocation2] sm:$0xff] %vm22, 0.0
    %24 = vst.msk [vmem:[#allocation2 + $0x8] sm:$0xff] %vm22, 0.0
    %25 = vst.msk [vmem:[#allocation2 + $0x10] sm:$0xff] %vm22, 0.0
    %26 = vst.msk [vmem:[#allocation2 + $0x18] sm:$0xff] %vm22, 0.0
    %27 = vst.msk [vmem:[#allocation2 + $0x20] sm:$0xff] %vm22, 0.0
    %28 = vst.msk [vmem:[#allocation2 + $0x28] sm:$0xff] %vm22, 0.0
    %29 = vst.msk [vmem:[#allocation2 + $0x30] sm:$0xff] %vm22, 0.0
    %30 = vst.msk [vmem:[#allocation2 + $0x38] sm:$0xff] %vm22, 0.0
    %31 = vst.msk [vmem:[#allocation2 + $0x40] sm:$0xff] %vm22, 0.0
    %32 = vst.msk [vmem:[#allocation2 + $0x48] sm:$0xff] %vm22, 0.0
    %33 = vst.msk [vmem:[#allocation2 + $0x50] sm:$0xff] %vm22, 0.0
    %34 = vst.msk [vmem:[#allocation2 + $0x58] sm:$0xff] %vm22, 0.0
    %35 = vst.msk [vmem:[#allocation2 + $0x60] sm:$0xff] %vm22, 0.0
    %36 = vst.msk [vmem:[#allocation2 + $0x68] sm:$0xff] %vm22, 0.0
    %37 = vst.msk [vmem:[#allocation2 + $0x70] sm:$0xff] %vm22, 0.0
    %38 = vst.msk [vmem:[#allocation2 + $0x78] sm:$0xff] %vm22, 0.0
  $region21: #{gcn_forward.3} parent=0 // pred_fallthru
    _
  %s39 = smul.u32 0, 128
  %s40 = sshra.s32 %s39, 3
  %s41 = sand.u32 %s39, 7
  %s42 = smul.addr %s40, 4
  %s43 = scalar_lea.vmem %s1, %s42
  %v44 = vld [vmem:[%s43] sm:$0xf]
  %v45 = vld [vmem:[%s43 + $0x4] sm:$0xf]
  %v46 = vld [vmem:[%s43 + $0x8] sm:$0xf]
  %v47 = vld [vmem:[%s43 + $0xc] sm:$0xf]
  %v48 = vld [vmem:[%s43 + $0x10] sm:$0xf]
  %v49 = vld [vmem:[%s43 + $0x14] sm:$0xf]
  %v50 = vld [vmem:[%s43 + $0x18] sm:$0xf]
  %v51 = vld [vmem:[%s43 + $0x1c] sm:$0xf]
  %v52 = vld [vmem:[%s43 + $0x20] sm:$0xf]
  %v53 = vld [vmem:[%s43 + $0x24] sm:$0xf]
  %v54 = vld [vmem:[%s43 + $0x28] sm:$0xf]
  %v55 = vld [vmem:[%s43 + $0x2c] sm:$0xf]
  %v56 = vld [vmem:[%s43 + $0x30] sm:$0xf]
  %v57 = vld [vmem:[%s43 + $0x34] sm:$0xf]
  %v58 = vld [vmem:[%s43 + $0x38] sm:$0xf]
  %v59 = vld [vmem:[%s43 + $0x3c] sm:$0xf]
  %v60 = vld [vmem:[#allocation2] sm:$0xff]
  %v61 = vld [vmem:[#allocation2 + $0x8] sm:$0xff]
  %v62 = vld [vmem:[#allocation2 + $0x10] sm:$0xff]
  %v63 = vld [vmem:[#allocation2 + $0x18] sm:$0xff]
  %v64 = vld [vmem:[#allocation2 + $0x20] sm:$0xff]
  %v65 = vld [vmem:[#allocation2 + $0x28] sm:$0xff]
  %v66 = vld [vmem:[#allocation2 + $0x30] sm:$0xff]
  %v67 = vld [vmem:[#allocation2 + $0x38] sm:$0xff]
  %v68 = vld [vmem:[#allocation2 + $0x40] sm:$0xff]
  %v69 = vld [vmem:[#allocation2 + $0x48] sm:$0xff]
  %v70 = vld [vmem:[#allocation2 + $0x50] sm:$0xff]
  %v71 = vld [vmem:[#allocation2 + $0x58] sm:$0xff]
  %v72 = vld [vmem:[#allocation2 + $0x60] sm:$0xff]
  %v73 = vld [vmem:[#allocation2 + $0x68] sm:$0xff]
  %v74 = vld [vmem:[#allocation2 + $0x70] sm:$0xff]
  %v75 = vld [vmem:[#allocation2 + $0x78] sm:$0xff]
  %v76 = vld [vmem:[%s0] sm:$0xf]
  %v77 = vld [vmem:[%s0 + $0x4] sm:$0xf]
  %v78 = vld [vmem:[%s0 + $0x8] sm:$0xf]
  %v79 = vld [vmem:[%s0 + $0xc] sm:$0xf]
  %v80 = vld [vmem:[%s0 + $0x10] sm:$0xf]
  %v81 = vld [vmem:[%s0 + $0x14] sm:$0xf]
  %v82 = vld [vmem:[%s0 + $0x18] sm:$0xf]
  %v83 = vld [vmem:[%s0 + $0x1c] sm:$0xf]
  %v84 = vld [vmem:[%s0 + $0x20] sm:$0xf]
  %v85 = vld [vmem:[%s0 + $0x24] sm:$0xf]
  %v86 = vld [vmem:[%s0 + $0x28] sm:$0xf]
  %v87 = vld [vmem:[%s0 + $0x2c] sm:$0xf]
  %v88 = vld [vmem:[%s0 + $0x30] sm:$0xf]
  %v89 = vld [vmem:[%s0 + $0x34] sm:$0xf]
  %v90 = vld [vmem:[%s0 + $0x38] sm:$0xf]
  %v91 = vld [vmem:[%s0 + $0x3c] sm:$0xf]
  %v108 = vunpack.c.l.b16 %v76
  %v109 = vunpack.c.l.b16 %v77
  %v110 = vunpack.c.l.b16 %v78
  %v111 = vunpack.c.l.b16 %v79
  %v112 = vunpack.c.l.b16 %v80
  %v113 = vunpack.c.l.b16 %v81
  %v114 = vunpack.c.l.b16 %v82
  %v115 = vunpack.c.l.b16 %v83
  %v116 = vunpack.c.l.b16 %v84
  %v117 = vunpack.c.l.b16 %v85
  %v118 = vunpack.c.l.b16 %v86
  %v119 = vunpack.c.l.b16 %v87
  %v120 = vunpack.c.l.b16 %v88
  %v121 = vunpack.c.l.b16 %v89
  %v122 = vunpack.c.l.b16 %v90
  %v123 = vunpack.c.l.b16 %v91
  %v124 = vpack.c.b16 %v109, %v108
  %v125 = vpack.c.b16 %v111, %v110
  %v126 = vpack.c.b16 %v113, %v112
  %v127 = vpack.c.b16 %v115, %v114
  %v128 = vpack.c.b16 %v117, %v116
  %v129 = vpack.c.b16 %v119, %v118
  %v130 = vpack.c.b16 %v121, %v120
  %v131 = vpack.c.b16 %v123, %v122
  %v156 = vunpack.c.l.b16 %v44
  %v157 = vunpack.c.l.b16 %v45
  %v158 = vunpack.c.l.b16 %v46
  %v159 = vunpack.c.l.b16 %v47
  %v160 = vunpack.c.l.b16 %v48
  %v161 = vunpack.c.l.b16 %v49
  %v162 = vunpack.c.l.b16 %v50
  %v163 = vunpack.c.l.b16 %v51
  %v164 = vunpack.c.l.b16 %v52
  %v165 = vunpack.c.l.b16 %v53
  %v166 = vunpack.c.l.b16 %v54
  %v167 = vunpack.c.l.b16 %v55
  %v168 = vunpack.c.l.b16 %v56
  %v169 = vunpack.c.l.b16 %v57
  %v170 = vunpack.c.l.b16 %v58
  %v171 = vunpack.c.l.b16 %v59
  %v172 = vpack.c.b16 %v157, %v156
  %v173 = vpack.c.b16 %v159, %v158
  %v174 = vpack.c.b16 %v161, %v160
  %v175 = vpack.c.b16 %v163, %v162
  %v176 = vpack.c.b16 %v165, %v164
  %v177 = vpack.c.b16 %v167, %v166
  %v178 = vpack.c.b16 %v169, %v168
  %v179 = vpack.c.b16 %v171, %v170
  %188 = vmatprep.subr.bf16.mxu0 0
  %189 = vmatpush1.bf16.msra.mxu0 %v172
  %190 = vmatprep.subr.bf16.mxu0 0
  %191 = vmatpush1.bf16.msra.mxu0 %v173
  %192 = vmatprep.subr.bf16.mxu0 0
  %193 = vmatpush1.bf16.msra.mxu0 %v174
  %194 = vmatprep.subr.bf16.mxu0 0
  %195 = vmatpush1.bf16.msra.mxu0 %v175
  %196 = vmatprep.subr.bf16.mxu0 0
  %197 = vmatpush1.bf16.msra.mxu0 %v176
  %198 = vmatprep.subr.bf16.mxu0 0
  %199 = vmatpush1.bf16.msra.mxu0 %v177
  %200 = vmatprep.subr.bf16.mxu0 0
  %201 = vmatpush1.bf16.msra.mxu0 %v178
  %202 = vmatprep.subr.bf16.mxu0 0
  %203 = vmatpush1.bf16.msra.mxu0 %v179
  %204 = vmatprep.subr.bf16.mxu0 0
  %205 = vmatpush1.bf16.msra.mxu0 0
  %206 = vmatprep.subr.bf16.mxu0 0
  %207 = vmatpush1.bf16.msra.mxu0 0
  %208 = vmatprep.subr.bf16.mxu0 0
  %209 = vmatpush1.bf16.msra.mxu0 0
  %210 = vmatprep.subr.bf16.mxu0 0
  %211 = vmatpush1.bf16.msra.mxu0 0
  %212 = vmatprep.subr.bf16.mxu0 0
  %213 = vmatpush1.bf16.msra.mxu0 0
  %214 = vmatprep.subr.bf16.mxu0 0
  %215 = vmatpush1.bf16.msra.mxu0 0
  %216 = vmatprep.subr.bf16.mxu0 0
  %217 = vmatpush1.bf16.msra.mxu0 0
  %218 = vmatprep.subr.bf16.mxu0 0
  %219 = vmatpush1.bf16.msra.mxu0 0
  %220 = vmatprep.mubr.bf16.mxu0 0
  %221 = vmatmul.mubr.bf16.gmra.mrb[0].mxu0 %v124
  %v222 = vpop.f32.mrb[0].mxu0
  %v223 = vadd.f32 0.0, %v222
  %v224 = vpop.f32.mrb[0].mxu0
  %v225 = vpop.f32.mrb[0].mxu0
  %v226 = vadd.f32 0.0, %v225
  %v227 = vpop.f32.mrb[0].mxu0
  %228 = vmatprep.mubr.bf16.mxu0 0
  %229 = vmatmul.mubr.bf16.gmra.mrb[0].mxu0 %v125
  %v230 = vpop.f32.mrb[0].mxu0
  %v231 = vadd.f32 0.0, %v230
  %v232 = vpop.f32.mrb[0].mxu0
  %v233 = vpop.f32.mrb[0].mxu0
  %v234 = vadd.f32 0.0, %v233
  %v235 = vpop.f32.mrb[0].mxu0
  %236 = vmatprep.mubr.bf16.mxu0 0
  %237 = vmatmul.mubr.bf16.gmra.mrb[0].mxu0 %v126
  %v238 = vpop.f32.mrb[0].mxu0
  %v239 = vadd.f32 0.0, %v238
  %v240 = vpop.f32.mrb[0].mxu0
  %v241 = vpop.f32.mrb[0].mxu0
  %v242 = vadd.f32 0.0, %v241
  %v243 = vpop.f32.mrb[0].mxu0
  %244 = vmatprep.mubr.bf16.mxu0 0
  %245 = vmatmul.mubr.bf16.gmra.mrb[0].mxu0 %v127
  %v246 = vpop.f32.mrb[0].mxu0
  %v247 = vadd.f32 0.0, %v246
  %v248 = vpop.f32.mrb[0].mxu0
  %v249 = vpop.f32.mrb[0].mxu0
  %v250 = vadd.f32 0.0, %v249
  %v251 = vpop.f32.mrb[0].mxu0
  %252 = vmatprep.mubr.bf16.mxu0 0
  %253 = vmatmul.mubr.bf16.gmra.mrb[0].mxu0 %v128
  %v254 = vpop.f32.mrb[0].mxu0
  %v255 = vadd.f32 0.0, %v254
  %v256 = vpop.f32.mrb[0].mxu0
  %v257 = vpop.f32.mrb[0].mxu0
  %v258 = vadd.f32 0.0, %v257
  %v259 = vpop.f32.mrb[0].mxu0
  %260 = vmatprep.mubr.bf16.mxu0 0
  %261 = vmatmul.mubr.bf16.gmra.mrb[0].mxu0 %v129
  %v262 = vpop.f32.mrb[0].mxu0
  %v263 = vadd.f32 0.0, %v262
  %v264 = vpop.f32.mrb[0].mxu0
  %v265 = vpop.f32.mrb[0].mxu0
  %v266 = vadd.f32 0.0, %v265
  %v267 = vpop.f32.mrb[0].mxu0
  %268 = vmatprep.mubr.bf16.mxu0 0
  %269 = vmatmul.mubr.bf16.gmra.mrb[0].mxu0 %v130
  %v270 = vpop.f32.mrb[0].mxu0
  %v271 = vadd.f32 0.0, %v270
  %v272 = vpop.f32.mrb[0].mxu0
  %v273 = vpop.f32.mrb[0].mxu0
  %v274 = vadd.f32 0.0, %v273
  %v275 = vpop.f32.mrb[0].mxu0
  %276 = vmatprep.mubr.bf16.mxu0 0
  %277 = vmatmul.mubr.bf16.gmra.mrb[0].mxu0 %v131
  %v278 = vpop.f32.mrb[0].mxu0
  %v279 = vadd.f32 0.0, %v278
  %v280 = vpop.f32.mrb[0].mxu0
  %v281 = vpop.f32.mrb[0].mxu0
  %v282 = vadd.f32 0.0, %v281
  %v283 = vpop.f32.mrb[0].mxu0
  %284 = vdwg.mxu0
  %v285 = vadd.f32 %v60, %v223
  %v286 = vadd.f32 %v61, %v226
  %v287 = vadd.f32 %v62, %v231
  %v288 = vadd.f32 %v63, %v234
  %v289 = vadd.f32 %v64, %v239
  %v290 = vadd.f32 %v65, %v242
  %v291 = vadd.f32 %v66, %v247
  %v292 = vadd.f32 %v67, %v250
  %v293 = vadd.f32 %v68, %v255
  %v294 = vadd.f32 %v69, %v258
  %v295 = vadd.f32 %v70, %v263
  %v296 = vadd.f32 %v71, %v266
  %v297 = vadd.f32 %v72, %v271
  %v298 = vadd.f32 %v73, %v274
  %v299 = vadd.f32 %v74, %v279
  %v300 = vadd.f32 %v75, %v282
  %vm301 = vcmask 130048
  %302 = vst.msk [vmem:[#allocation2] sm:$0xff] %vm301, %v285
  %303 = vst.msk [vmem:[#allocation2 + $0x8] sm:$0xff] %vm301, %v286
  %304 = vst.msk [vmem:[#allocation2 + $0x10] sm:$0xff] %vm301, %v287
  %305 = vst.msk [vmem:[#allocation2 + $0x18] sm:$0xff] %vm301, %v288
  %306 = vst.msk [vmem:[#allocation2 + $0x20] sm:$0xff] %vm301, %v289
  %307 = vst.msk [vmem:[#allocation2 + $0x28] sm:$0xff] %vm301, %v290
  %308 = vst.msk [vmem:[#allocation2 + $0x30] sm:$0xff] %vm301, %v291
  %309 = vst.msk [vmem:[#allocation2 + $0x38] sm:$0xff] %vm301, %v292
  %310 = vst.msk [vmem:[#allocation2 + $0x40] sm:$0xff] %vm301, %v293
  %311 = vst.msk [vmem:[#allocation2 + $0x48] sm:$0xff] %vm301, %v294
  %312 = vst.msk [vmem:[#allocation2 + $0x50] sm:$0xff] %vm301, %v295
  %313 = vst.msk [vmem:[#allocation2 + $0x58] sm:$0xff] %vm301, %v296
  %314 = vst.msk [vmem:[#allocation2 + $0x60] sm:$0xff] %vm301, %v297
  %315 = vst.msk [vmem:[#allocation2 + $0x68] sm:$0xff] %vm301, %v298
  %316 = vst.msk [vmem:[#allocation2 + $0x70] sm:$0xff] %vm301, %v299
  %317 = vst.msk [vmem:[#allocation2 + $0x78] sm:$0xff] %vm301, %v300
  // Predicated region
  $region22: #{gcn_forward.3} parent=0 // pred_check
    %p318 = pneg %p18
  $region23: #{gcn_forward.3} parent=0 // pred_check_branch
    %320 = sbr.rel (%p318) target = $region25
  $region24: #{gcn_forward.3} parent=0 // pred_region
    %v321 = vld [vmem:[#allocation2] sm:$0xff]
    %v322 = vld [vmem:[#allocation2 + $0x8] sm:$0xff]
    %v323 = vld [vmem:[#allocation2 + $0x10] sm:$0xff]
    %v324 = vld [vmem:[#allocation2 + $0x18] sm:$0xff]
    %v325 = vld [vmem:[#allocation2 + $0x20] sm:$0xff]
    %v326 = vld [vmem:[#allocation2 + $0x28] sm:$0xff]
    %v327 = vld [vmem:[#allocation2 + $0x30] sm:$0xff]
    %v328 = vld [vmem:[#allocation2 + $0x38] sm:$0xff]
    %v329 = vld [vmem:[#allocation2 + $0x40] sm:$0xff]
    %v330 = vld [vmem:[#allocation2 + $0x48] sm:$0xff]
    %v331 = vld [vmem:[#allocation2 + $0x50] sm:$0xff]
    %v332 = vld [vmem:[#allocation2 + $0x58] sm:$0xff]
    %v333 = vld [vmem:[#allocation2 + $0x60] sm:$0xff]
    %v334 = vld [vmem:[#allocation2 + $0x68] sm:$0xff]
    %v335 = vld [vmem:[#allocation2 + $0x70] sm:$0xff]
    %v336 = vld [vmem:[#allocation2 + $0x78] sm:$0xff]
    %v337 = vld [vmem:[%s2] sm:$0xff]
    %v338 = vld [vmem:[%s2 + $0x8] sm:$0xff]
    %v339 = vld [vmem:[%s3] sm:$0x1]
    %v341 = vlaneseq
    %v342 = vshrl.u32 %v341, 7
    %v343 = vsub.s32 0, %v342
    %v344 = vrot.slane %v339, %v343
    %v347 = vsel %vm301, %v321, 0
    %v350 = vsel %vm301, %v322, 0
    %v353 = vsel %vm301, %v323, 0
    %v356 = vsel %vm301, %v324, 0
    %v359 = vsel %vm301, %v325, 0
    %v362 = vsel %vm301, %v326, 0
    %v365 = vsel %vm301, %v327, 0
    %v368 = vsel %vm301, %v328, 0
    %v371 = vsel %vm301, %v329, 0
    %v374 = vsel %vm301, %v330, 0
    %v377 = vsel %vm301, %v331, 0
    %v380 = vsel %vm301, %v332, 0
    %v383 = vsel %vm301, %v333, 0
    %v386 = vsel %vm301, %v334, 0
    %v389 = vsel %vm301, %v335, 0
    %v392 = vsel %vm301, %v336, 0
    %394 = vmatprep.subr.mxu0 0.0
    %395 = vmatpush1.msra.mxu0 %v337
    %396 = vmatprep.subr.mxu0 0.0
    %397 = vmatpush1.msra.mxu0 %v338
    %398 = vmatprep.subr.mxu0 0.0
    %399 = vmatpush1.msra.mxu0 0.0
    %400 = vmatprep.subr.mxu0 0.0
    %401 = vmatpush1.msra.mxu0 0.0
    %402 = vmatprep.subr.mxu0 0.0
    %403 = vmatpush1.msra.mxu0 0.0
    %404 = vmatprep.subr.mxu0 0.0
    %405 = vmatpush1.msra.mxu0 0.0
    %406 = vmatprep.subr.mxu0 0.0
    %407 = vmatpush1.msra.mxu0 0.0
    %408 = vmatprep.subr.mxu0 0.0
    %409 = vmatpush1.msra.mxu0 0.0
    %410 = vmatprep.subr.mxu0 0.0
    %411 = vmatpush1.msra.mxu0 0.0
    %412 = vmatprep.subr.mxu0 0.0
    %413 = vmatpush1.msra.mxu0 0.0
    %414 = vmatprep.subr.mxu0 0.0
    %415 = vmatpush1.msra.mxu0 0.0
    %416 = vmatprep.subr.mxu0 0.0
    %417 = vmatpush1.msra.mxu0 0.0
    %418 = vmatprep.subr.mxu0 0.0
    %419 = vmatpush1.msra.mxu0 0.0
    %420 = vmatprep.subr.mxu0 0.0
    %421 = vmatpush1.msra.mxu0 0.0
    %422 = vmatprep.subr.mxu0 0.0
    %423 = vmatpush1.msra.mxu0 0.0
    %424 = vmatprep.subr.mxu0 0.0
    %425 = vmatpush1.msra.mxu0 0.0
    %426 = vmatprep.subr.mxu0 0.0
    %427 = vmatpush1.msra.mxu0 0.0
    %428 = vmatprep.subr.mxu0 0.0
    %429 = vmatpush1.msra.mxu0 0.0
    %430 = vmatprep.subr.mxu0 0.0
    %431 = vmatpush1.msra.mxu0 0.0
    %432 = vmatprep.subr.mxu0 0.0
    %433 = vmatpush1.msra.mxu0 0.0
    %434 = vmatprep.subr.mxu0 0.0
    %435 = vmatpush1.msra.mxu0 0.0
    %436 = vmatprep.subr.mxu0 0.0
    %437 = vmatpush1.msra.mxu0 0.0
    %438 = vmatprep.subr.mxu0 0.0
    %439 = vmatpush1.msra.mxu0 0.0
    %440 = vmatprep.subr.mxu0 0.0
    %441 = vmatpush1.msra.mxu0 0.0
    %442 = vmatprep.subr.mxu0 0.0
    %443 = vmatpush1.msra.mxu0 0.0
    %444 = vmatprep.subr.mxu0 0.0
    %445 = vmatpush1.msra.mxu0 0.0
    %446 = vmatprep.subr.mxu0 0.0
    %447 = vmatpush1.msra.mxu0 0.0
    %448 = vmatprep.subr.mxu0 0.0
    %449 = vmatpush1.msra.mxu0 0.0
    %450 = vmatprep.subr.mxu0 0.0
    %451 = vmatpush1.msra.mxu0 0.0
    %452 = vmatprep.subr.mxu0 0.0
    %453 = vmatpush1.msra.mxu0 0.0
    %454 = vmatprep.subr.mxu0 0.0
    %455 = vmatpush1.msra.mxu0 0.0
    %456 = vmatprep.subr.mxu0 0.0
    %457 = vmatpush1.msra.mxu0 0.0
    %458 = vmatprep.mubr.f32.mxu0 0.0
    %459 = vmatmul.mubr.f32.gmra.mrb[0].mxu0 %v347
    %v460 = vpop.f32.mrb[0].mxu0
    %v461 = vadd.f32 %v344, %v460
    %v462 = vpop.f32.mrb[0].mxu0
    %463 = vmatprep.mubr.f32.mxu0 0.0
    %464 = vmatmul.mubr.f32.gmra.mrb[0].mxu0 %v350
    %v465 = vpop.f32.mrb[0].mxu0
    %v466 = vadd.f32 %v344, %v465
    %v467 = vpop.f32.mrb[0].mxu0
    %468 = vmatprep.mubr.f32.mxu0 0.0
    %469 = vmatmul.mubr.f32.gmra.mrb[0].mxu0 %v353
    %v470 = vpop.f32.mrb[0].mxu0
    %v471 = vadd.f32 %v344, %v470
    %v472 = vpop.f32.mrb[0].mxu0
    %473 = vmatprep.mubr.f32.mxu0 0.0
    %474 = vmatmul.mubr.f32.gmra.mrb[0].mxu0 %v356
    %v475 = vpop.f32.mrb[0].mxu0
    %v476 = vadd.f32 %v344, %v475
    %v477 = vpop.f32.mrb[0].mxu0
    %478 = vmatprep.mubr.f32.mxu0 0.0
    %479 = vmatmul.mubr.f32.gmra.mrb[0].mxu0 %v359
    %v480 = vpop.f32.mrb[0].mxu0
    %v481 = vadd.f32 %v344, %v480
    %v482 = vpop.f32.mrb[0].mxu0
    %483 = vmatprep.mubr.f32.mxu0 0.0
    %484 = vmatmul.mubr.f32.gmra.mrb[0].mxu0 %v362
    %v485 = vpop.f32.mrb[0].mxu0
    %v486 = vadd.f32 %v344, %v485
    %v487 = vpop.f32.mrb[0].mxu0
    %488 = vmatprep.mubr.f32.mxu0 0.0
    %489 = vmatmul.mubr.f32.gmra.mrb[0].mxu0 %v365
    %v490 = vpop.f32.mrb[0].mxu0
    %v491 = vadd.f32 %v344, %v490
    %v492 = vpop.f32.mrb[0].mxu0
    %493 = vmatprep.mubr.f32.mxu0 0.0
    %494 = vmatmul.mubr.f32.gmra.mrb[0].mxu0 %v368
    %v495 = vpop.f32.mrb[0].mxu0
    %v496 = vadd.f32 %v344, %v495
    %v497 = vpop.f32.mrb[0].mxu0
    %498 = vmatprep.mubr.f32.mxu0 0.0
    %499 = vmatmul.mubr.f32.gmra.mrb[0].mxu0 %v371
    %v500 = vpop.f32.mrb[0].mxu0
    %v501 = vadd.f32 %v344, %v500
    %v502 = vpop.f32.mrb[0].mxu0
    %503 = vmatprep.mubr.f32.mxu0 0.0
    %504 = vmatmul.mubr.f32.gmra.mrb[0].mxu0 %v374
    %v505 = vpop.f32.mrb[0].mxu0
    %v506 = vadd.f32 %v344, %v505
    %v507 = vpop.f32.mrb[0].mxu0
    %508 = vmatprep.mubr.f32.mxu0 0.0
    %509 = vmatmul.mubr.f32.gmra.mrb[0].mxu0 %v377
    %v510 = vpop.f32.mrb[0].mxu0
    %v511 = vadd.f32 %v344, %v510
    %v512 = vpop.f32.mrb[0].mxu0
    %513 = vmatprep.mubr.f32.mxu0 0.0
    %514 = vmatmul.mubr.f32.gmra.mrb[0].mxu0 %v380
    %v515 = vpop.f32.mrb[0].mxu0
    %v516 = vadd.f32 %v344, %v515
    %v517 = vpop.f32.mrb[0].mxu0
    %518 = vmatprep.mubr.f32.mxu0 0.0
    %519 = vmatmul.mubr.f32.gmra.mrb[0].mxu0 %v383
    %v520 = vpop.f32.mrb[0].mxu0
    %v521 = vadd.f32 %v344, %v520
    %v522 = vpop.f32.mrb[0].mxu0
    %523 = vmatprep.mubr.f32.mxu0 0.0
    %524 = vmatmul.mubr.f32.gmra.mrb[0].mxu0 %v386
    %v525 = vpop.f32.mrb[0].mxu0
    %v526 = vadd.f32 %v344, %v525
    %v527 = vpop.f32.mrb[0].mxu0
    %528 = vmatprep.mubr.f32.mxu0 0.0
    %529 = vmatmul.mubr.f32.gmra.mrb[0].mxu0 %v389
    %v530 = vpop.f32.mrb[0].mxu0
    %v531 = vadd.f32 %v344, %v530
    %v532 = vpop.f32.mrb[0].mxu0
    %533 = vmatprep.mubr.f32.mxu0 0.0
    %534 = vmatmul.mubr.f32.gmra.mrb[0].mxu0 %v392
    %v535 = vpop.f32.mrb[0].mxu0
    %v536 = vadd.f32 %v344, %v535
    %v537 = vpop.f32.mrb[0].mxu0
    %538 = vdwg.mxu0
    %vm539 = vcmask 31744
    %v540 = vsel %vm539, %v461, -inf
    %541 = vmax.xlane.f32.xlu0 %v540
    %v542 = vpop.xlane.xlu0 %541
    %v543 = vsel %vm539, %v466, -inf
    %544 = vmax.xlane.f32.xlu0 %v543
    %v545 = vpop.xlane.xlu0 %544
    %v546 = vsel %vm539, %v471, -inf
    %547 = vmax.xlane.f32.xlu0 %v546
    %v548 = vpop.xlane.xlu0 %547
    %v549 = vsel %vm539, %v476, -inf
    %550 = vmax.xlane.f32.xlu0 %v549
    %v551 = vpop.xlane.xlu0 %550
    %v552 = vsel %vm539, %v481, -inf
    %553 = vmax.xlane.f32.xlu0 %v552
    %v554 = vpop.xlane.xlu0 %553
    %v555 = vsel %vm539, %v486, -inf
    %556 = vmax.xlane.f32.xlu0 %v555
    %v557 = vpop.xlane.xlu0 %556
    %v558 = vsel %vm539, %v491, -inf
    %559 = vmax.xlane.f32.xlu0 %v558
    %v560 = vpop.xlane.xlu0 %559
    %v561 = vsel %vm539, %v496, -inf
    %562 = vmax.xlane.f32.xlu0 %v561
    %v563 = vpop.xlane.xlu0 %562
    %v564 = vsel %vm539, %v501, -inf
    %565 = vmax.xlane.f32.xlu0 %v564
    %v566 = vpop.xlane.xlu0 %565
    %v567 = vsel %vm539, %v506, -inf
    %568 = vmax.xlane.f32.xlu0 %v567
    %v569 = vpop.xlane.xlu0 %568
    %v570 = vsel %vm539, %v511, -inf
    %571 = vmax.xlane.f32.xlu0 %v570
    %v572 = vpop.xlane.xlu0 %571
    %v573 = vsel %vm539, %v516, -inf
    %574 = vmax.xlane.f32.xlu0 %v573
    %v575 = vpop.xlane.xlu0 %574
    %v576 = vsel %vm539, %v521, -inf
    %577 = vmax.xlane.f32.xlu0 %v576
    %v578 = vpop.xlane.xlu0 %577
    %v579 = vsel %vm539, %v526, -inf
    %580 = vmax.xlane.f32.xlu0 %v579
    %v581 = vpop.xlane.xlu0 %580
    %v582 = vsel %vm539, %v531, -inf
    %583 = vmax.xlane.f32.xlu0 %v582
    %v584 = vpop.xlane.xlu0 %583
    %v585 = vsel %vm539, %v536, -inf
    %586 = vmax.xlane.f32.xlu0 %v585
    %v587 = vpop.xlane.xlu0 %586
    %v588 = vsub.f32 %v461, %v542
    %v589 = vsub.f32 %v466, %v545
    %v590 = vsub.f32 %v471, %v548
    %v591 = vsub.f32 %v476, %v551
    %v592 = vsub.f32 %v481, %v554
    %v593 = vsub.f32 %v486, %v557
    %v594 = vsub.f32 %v491, %v560
    %v595 = vsub.f32 %v496, %v563
    %v596 = vsub.f32 %v501, %v566
    %v597 = vsub.f32 %v506, %v569
    %v598 = vsub.f32 %v511, %v572
    %v599 = vsub.f32 %v516, %v575
    %v600 = vsub.f32 %v521, %v578
    %v601 = vsub.f32 %v526, %v581
    %v602 = vsub.f32 %v531, %v584
    %v603 = vsub.f32 %v536, %v587
    %v604 = vmul.f32 %v588, 1.442695
    %v605 = vpow.pop %v604
    %v606 = vmul.f32 %v589, 1.442695
    %v607 = vpow.pop %v606
    %v608 = vmul.f32 %v590, 1.442695
    %v609 = vpow.pop %v608
    %v610 = vmul.f32 %v591, 1.442695
    %v611 = vpow.pop %v610
    %v612 = vmul.f32 %v592, 1.442695
    %v613 = vpow.pop %v612
    %v614 = vmul.f32 %v593, 1.442695
    %v615 = vpow.pop %v614
    %v616 = vmul.f32 %v594, 1.442695
    %v617 = vpow.pop %v616
    %v618 = vmul.f32 %v595, 1.442695
    %v619 = vpow.pop %v618
    %v620 = vmul.f32 %v596, 1.442695
    %v621 = vpow.pop %v620
    %v622 = vmul.f32 %v597, 1.442695
    %v623 = vpow.pop %v622
    %v624 = vmul.f32 %v598, 1.442695
    %v625 = vpow.pop %v624
    %v626 = vmul.f32 %v599, 1.442695
    %v627 = vpow.pop %v626
    %v628 = vmul.f32 %v600, 1.442695
    %v629 = vpow.pop %v628
    %v630 = vmul.f32 %v601, 1.442695
    %v631 = vpow.pop %v630
    %v632 = vmul.f32 %v602, 1.442695
    %v633 = vpow.pop %v632
    %v634 = vmul.f32 %v603, 1.442695
    %v635 = vpow.pop %v634
    %v636 = vsel %vm539, %v605, 0.0
    %637 = vadd.xlane.f32.xlu0 %v636
    %v638 = vpop.xlane.xlu0 %637
    %v639 = vsel %vm539, %v607, 0.0
    %640 = vadd.xlane.f32.xlu0 %v639
    %v641 = vpop.xlane.xlu0 %640
    %v642 = vsel %vm539, %v609, 0.0
    %643 = vadd.xlane.f32.xlu0 %v642
    %v644 = vpop.xlane.xlu0 %643
    %v645 = vsel %vm539, %v611, 0.0
    %646 = vadd.xlane.f32.xlu0 %v645
    %v647 = vpop.xlane.xlu0 %646
    %v648 = vsel %vm539, %v613, 0.0
    %649 = vadd.xlane.f32.xlu0 %v648
    %v650 = vpop.xlane.xlu0 %649
    %v651 = vsel %vm539, %v615, 0.0
    %652 = vadd.xlane.f32.xlu0 %v651
    %v653 = vpop.xlane.xlu0 %652
    %v654 = vsel %vm539, %v617, 0.0
    %655 = vadd.xlane.f32.xlu0 %v654
    %v656 = vpop.xlane.xlu0 %655
    %v657 = vsel %vm539, %v619, 0.0
    %658 = vadd.xlane.f32.xlu0 %v657
    %v659 = vpop.xlane.xlu0 %658
    %v660 = vsel %vm539, %v621, 0.0
    %661 = vadd.xlane.f32.xlu0 %v660
    %v662 = vpop.xlane.xlu0 %661
    %v663 = vsel %vm539, %v623, 0.0
    %664 = vadd.xlane.f32.xlu0 %v663
    %v665 = vpop.xlane.xlu0 %664
    %v666 = vsel %vm539, %v625, 0.0
    %667 = vadd.xlane.f32.xlu0 %v666
    %v668 = vpop.xlane.xlu0 %667
    %v669 = vsel %vm539, %v627, 0.0
    %670 = vadd.xlane.f32.xlu0 %v669
    %v671 = vpop.xlane.xlu0 %670
    %v672 = vsel %vm539, %v629, 0.0
    %673 = vadd.xlane.f32.xlu0 %v672
    %v674 = vpop.xlane.xlu0 %673
    %v675 = vsel %vm539, %v631, 0.0
    %676 = vadd.xlane.f32.xlu0 %v675
    %v677 = vpop.xlane.xlu0 %676
    %v678 = vsel %vm539, %v633, 0.0
    %679 = vadd.xlane.f32.xlu0 %v678
    %v680 = vpop.xlane.xlu0 %679
    %v681 = vsel %vm539, %v635, 0.0
    %682 = vadd.xlane.f32.xlu0 %v681
    %v683 = vpop.xlane.xlu0 %682
    %v684 = vlog2.pop %v638
    %v685 = vmul.f32 %v684, 0.6931472
    %v686 = vlog2.pop %v641
    %v687 = vmul.f32 %v686, 0.6931472
    %v688 = vlog2.pop %v644
    %v689 = vmul.f32 %v688, 0.6931472
    %v690 = vlog2.pop %v647
    %v691 = vmul.f32 %v690, 0.6931472
    %v692 = vlog2.pop %v650
    %v693 = vmul.f32 %v692, 0.6931472
    %v694 = vlog2.pop %v653
    %v695 = vmul.f32 %v694, 0.6931472
    %v696 = vlog2.pop %v656
    %v697 = vmul.f32 %v696, 0.6931472
    %v698 = vlog2.pop %v659
    %v699 = vmul.f32 %v698, 0.6931472
    %v700 = vlog2.pop %v662
    %v701 = vmul.f32 %v700, 0.6931472
    %v702 = vlog2.pop %v665
    %v703 = vmul.f32 %v702, 0.6931472
    %v704 = vlog2.pop %v668
    %v705 = vmul.f32 %v704, 0.6931472
    %v706 = vlog2.pop %v671
    %v707 = vmul.f32 %v706, 0.6931472
    %v708 = vlog2.pop %v674
    %v709 = vmul.f32 %v708, 0.6931472
    %v710 = vlog2.pop %v677
    %v711 = vmul.f32 %v710, 0.6931472
    %v712 = vlog2.pop %v680
    %v713 = vmul.f32 %v712, 0.6931472
    %v714 = vlog2.pop %v683
    %v715 = vmul.f32 %v714, 0.6931472
    %v716 = vsub.f32 %v588, %v685
    %v717 = vsub.f32 %v589, %v687
    %v718 = vsub.f32 %v590, %v689
    %v719 = vsub.f32 %v591, %v691
    %v720 = vsub.f32 %v592, %v693
    %v721 = vsub.f32 %v593, %v695
    %v722 = vsub.f32 %v594, %v697
    %v723 = vsub.f32 %v595, %v699
    %v724 = vsub.f32 %v596, %v701
    %v725 = vsub.f32 %v597, %v703
    %v726 = vsub.f32 %v598, %v705
    %v727 = vsub.f32 %v599, %v707
    %v728 = vsub.f32 %v600, %v709
    %v729 = vsub.f32 %v601, %v711
    %v730 = vsub.f32 %v602, %v713
    %v731 = vsub.f32 %v603, %v715
    %732 = vst.msk [vmem:[%s4] sm:$0xff] %vm539, %v716
    %733 = vst.msk [vmem:[%s4 + $0x8] sm:$0xff] %vm539, %v717
    %734 = vst.msk [vmem:[%s4 + $0x10] sm:$0xff] %vm539, %v718
    %735 = vst.msk [vmem:[%s4 + $0x18] sm:$0xff] %vm539, %v719
    %736 = vst.msk [vmem:[%s4 + $0x20] sm:$0xff] %vm539, %v720
    %737 = vst.msk [vmem:[%s4 + $0x28] sm:$0xff] %vm539, %v721
    %738 = vst.msk [vmem:[%s4 + $0x30] sm:$0xff] %vm539, %v722
    %739 = vst.msk [vmem:[%s4 + $0x38] sm:$0xff] %vm539, %v723
    %740 = vst.msk [vmem:[%s4 + $0x40] sm:$0xff] %vm539, %v724
    %741 = vst.msk [vmem:[%s4 + $0x48] sm:$0xff] %vm539, %v725
    %742 = vst.msk [vmem:[%s4 + $0x50] sm:$0xff] %vm539, %v726
    %743 = vst.msk [vmem:[%s4 + $0x58] sm:$0xff] %vm539, %v727
    %744 = vst.msk [vmem:[%s4 + $0x60] sm:$0xff] %vm539, %v728
    %745 = vst.msk [vmem:[%s4 + $0x68] sm:$0xff] %vm539, %v729
    %746 = vst.msk [vmem:[%s4 + $0x70] sm:$0xff] %vm539, %v730
    %747 = vst.msk [vmem:[%s4 + $0x78] sm:$0xff] %vm539, %v731
  $region25: #{gcn_forward.3} parent=0 // pred_fallthru
    _
  // Predicated region
  $region26: #{gcn_forward.3} parent=0 // pred_check
    _
  $region27: #{gcn_forward.3} parent=0 // pred_check_branch
    %749 = sbr.rel (0) target = $region29
  $region28: #{gcn_forward.3} parent=0 // pred_region
    _
  $region29: #{gcn_forward.3} parent=0 // pred_fallthru
    _
  // Predicated region
  $region30: #{gcn_forward.3} parent=0 // pred_check
    _
  $region31: #{gcn_forward.3} parent=0 // pred_check_branch
    %751 = sbr.rel (0) target = $region33
  $region32: #{gcn_forward.3} parent=0 // pred_region
    _
  $region33: #{gcn_forward.3} parent=0 // pred_fallthru
    _

// kernel: gcn_forward.2
$region0: #{gcn_forward.2}
  #allocation0 [shape = 'u32[]', space=smem, size = 0x4, offset = 0x4, fixed_abs, tag = 'smem constant byte address 0x4 - core index']
  #allocation1 [shape = 'u32[144,128]{1,0:T(1,128)}', space=vmem, size = 0x12000, scoped, tag = 'internal scratch']
  #allocation2 [shape = 'f32[128,8]{1,0:T(8,128)}', space=vmem, size = 0x10000, scoped, tag = 'scratch operand']
  %s0 = inlined_call_operand.vmem [shape: bf16[128,128], index: 0, kind: input, shape index: {}]
  %s1 = inlined_call_operand.vmem [shape: bf16[128,8], index: 1, kind: input, shape index: {}]
  %s2 = inlined_call_operand.vmem [shape: f32[8,16], index: 2, kind: input, shape index: {}]
  %s3 = inlined_call_operand.vmem [shape: f32[1,16], index: 3, kind: input, shape index: {}]
  %s4 = inlined_call_operand.vmem [shape: bf16[128,16], index: 4, kind: output, shape index: {}]
  %s5 = sld [smem:[#allocation0]]
  $region34: #{gcn_forward.2} parent=0
    _
  %s7 = ssub.s32 1, %s5
  %s8 = scalar_select 0, %s7, %s5
  // Predicated region
  $region2: #{gcn_forward.2} parent=0 // pred_check
    _
  $region3: #{gcn_forward.2} parent=0 // pred_check_branch
    %10 = sbr.rel (0) target = $region5
  $region4: #{gcn_forward.2} parent=0 // pred_region
    _
  $region5: #{gcn_forward.2} parent=0 // pred_fallthru
    _
  // Predicated region
  $region6: #{gcn_forward.2} parent=0 // pred_check
    _
  $region7: #{gcn_forward.2} parent=0 // pred_check_branch
    %12 = sbr.rel (0) target = $region9
  $region8: #{gcn_forward.2} parent=0 // pred_region
    _
  $region9: #{gcn_forward.2} parent=0 // pred_fallthru
    _
  // Predicated region
  $region10: #{gcn_forward.2} parent=0 // pred_check
    _
  $region11: #{gcn_forward.2} parent=0 // pred_check_branch
    %14 = sbr.rel (0) target = $region13
  $region12: #{gcn_forward.2} parent=0 // pred_region
    _
  $region13: #{gcn_forward.2} parent=0 // pred_fallthru
    _
  // Predicated region
  $region14: #{gcn_forward.2} parent=0 // pred_check
    _
  $region15: #{gcn_forward.2} parent=0 // pred_check_branch
    %16 = sbr.rel (0) target = $region17
  $region16: #{gcn_forward.2} parent=0 // pred_region
    _
  $region17: #{gcn_forward.2} parent=0 // pred_fallthru
    _
  %p18 = scmp.eq.s32.totalorder 0, 0
  // Predicated region
  $region18: #{gcn_forward.2} parent=0 // pred_check
    %p19 = pneg %p18
  $region19: #{gcn_forward.2} parent=0 // pred_check_branch
    %21 = sbr.rel (%p19) target = $region21
  $region20: #{gcn_forward.2} parent=0 // pred_region
    %vm22 = vcmask 64512
    %23 = vst.msk [vmem:[#allocation2] sm:$0xff] %vm22, 0.0
    %24 = vst.msk [vmem:[#allocation2 + $0x8] sm:$0xff] %vm22, 0.0
    %25 = vst.msk [vmem:[#allocation2 + $0x10] sm:$0xff] %vm22, 0.0
    %26 = vst.msk [vmem:[#allocation2 + $0x18] sm:$0xff] %vm22, 0.0
    %27 = vst.msk [vmem:[#allocation2 + $0x20] sm:$0xff] %vm22, 0.0
    %28 = vst.msk [vmem:[#allocation2 + $0x28] sm:$0xff] %vm22, 0.0
    %29 = vst.msk [vmem:[#allocation2 + $0x30] sm:$0xff] %vm22, 0.0
    %30 = vst.msk [vmem:[#allocation2 + $0x38] sm:$0xff] %vm22, 0.0
    %31 = vst.msk [vmem:[#allocation2 + $0x40] sm:$0xff] %vm22, 0.0
    %32 = vst.msk [vmem:[#allocation2 + $0x48] sm:$0xff] %vm22, 0.0
    %33 = vst.msk [vmem:[#allocation2 + $0x50] sm:$0xff] %vm22, 0.0
    %34 = vst.msk [vmem:[#allocation2 + $0x58] sm:$0xff] %vm22, 0.0
    %35 = vst.msk [vmem:[#allocation2 + $0x60] sm:$0xff] %vm22, 0.0
    %36 = vst.msk [vmem:[#allocation2 + $0x68] sm:$0xff] %vm22, 0.0
    %37 = vst.msk [vmem:[#allocation2 + $0x70] sm:$0xff] %vm22, 0.0
    %38 = vst.msk [vmem:[#allocation2 + $0x78] sm:$0xff] %vm22, 0.0
  $region21: #{gcn_forward.2} parent=0 // pred_fallthru
    _
  %s39 = smul.u32 0, 128
  %s40 = sshra.s32 %s39, 3
  %s41 = sand.u32 %s39, 7
  %s42 = smul.addr %s40, 4
  %s43 = scalar_lea.vmem %s1, %s42
  %v44 = vld [vmem:[%s43] sm:$0xf]
  %v45 = vld [vmem:[%s43 + $0x4] sm:$0xf]
  %v46 = vld [vmem:[%s43 + $0x8] sm:$0xf]
  %v47 = vld [vmem:[%s43 + $0xc] sm:$0xf]
  %v48 = vld [vmem:[%s43 + $0x10] sm:$0xf]
  %v49 = vld [vmem:[%s43 + $0x14] sm:$0xf]
  %v50 = vld [vmem:[%s43 + $0x18] sm:$0xf]
  %v51 = vld [vmem:[%s43 + $0x1c] sm:$0xf]
  %v52 = vld [vmem:[%s43 + $0x20] sm:$0xf]
  %v53 = vld [vmem:[%s43 + $0x24] sm:$0xf]
  %v54 = vld [vmem:[%s43 + $0x28] sm:$0xf]
  %v55 = vld [vmem:[%s43 + $0x2c] sm:$0xf]
  %v56 = vld [vmem:[%s43 + $0x30] sm:$0xf]
  %v57 = vld [vmem:[%s43 + $0x34] sm:$0xf]
  %v58 = vld [vmem:[%s43 + $0x38] sm:$0xf]
  %v59 = vld [vmem:[%s43 + $0x3c] sm:$0xf]
  %v60 = vld [vmem:[#allocation2] sm:$0xff]
  %v61 = vld [vmem:[#allocation2 + $0x8] sm:$0xff]
  %v62 = vld [vmem:[#allocation2 + $0x10] sm:$0xff]
  %v63 = vld [vmem:[#allocation2 + $0x18] sm:$0xff]
  %v64 = vld [vmem:[#allocation2 + $0x20] sm:$0xff]
  %v65 = vld [vmem:[#allocation2 + $0x28] sm:$0xff]
  %v66 = vld [vmem:[#allocation2 + $0x30] sm:$0xff]
  %v67 = vld [vmem:[#allocation2 + $0x38] sm:$0xff]
  %v68 = vld [vmem:[#allocation2 + $0x40] sm:$0xff]
  %v69 = vld [vmem:[#allocation2 + $0x48] sm:$0xff]
  %v70 = vld [vmem:[#allocation2 + $0x50] sm:$0xff]
  %v71 = vld [vmem:[#allocation2 + $0x58] sm:$0xff]
  %v72 = vld [vmem:[#allocation2 + $0x60] sm:$0xff]
  %v73 = vld [vmem:[#allocation2 + $0x68] sm:$0xff]
  %v74 = vld [vmem:[#allocation2 + $0x70] sm:$0xff]
  %v75 = vld [vmem:[#allocation2 + $0x78] sm:$0xff]
  %v76 = vld [vmem:[%s0] sm:$0xf]
  %v77 = vld [vmem:[%s0 + $0x4] sm:$0xf]
  %v78 = vld [vmem:[%s0 + $0x8] sm:$0xf]
  %v79 = vld [vmem:[%s0 + $0xc] sm:$0xf]
  %v80 = vld [vmem:[%s0 + $0x10] sm:$0xf]
  %v81 = vld [vmem:[%s0 + $0x14] sm:$0xf]
  %v82 = vld [vmem:[%s0 + $0x18] sm:$0xf]
  %v83 = vld [vmem:[%s0 + $0x1c] sm:$0xf]
  %v84 = vld [vmem:[%s0 + $0x20] sm:$0xf]
  %v85 = vld [vmem:[%s0 + $0x24] sm:$0xf]
  %v86 = vld [vmem:[%s0 + $0x28] sm:$0xf]
  %v87 = vld [vmem:[%s0 + $0x2c] sm:$0xf]
  %v88 = vld [vmem:[%s0 + $0x30] sm:$0xf]
  %v89 = vld [vmem:[%s0 + $0x34] sm:$0xf]
  %v90 = vld [vmem:[%s0 + $0x38] sm:$0xf]
  %v91 = vld [vmem:[%s0 + $0x3c] sm:$0xf]
  %v108 = vunpack.c.l.b16 %v76
  %v109 = vunpack.c.l.b16 %v77
  %v110 = vunpack.c.l.b16 %v78
  %v111 = vunpack.c.l.b16 %v79
  %v112 = vunpack.c.l.b16 %v80
  %v113 = vunpack.c.l.b16 %v81
  %v114 = vunpack.c.l.b16 %v82
  %v115 = vunpack.c.l.b16 %v83
  %v116 = vunpack.c.l.b16 %v84
  %v117 = vunpack.c.l.b16 %v85
  %v118 = vunpack.c.l.b16 %v86
  %v119 = vunpack.c.l.b16 %v87
  %v120 = vunpack.c.l.b16 %v88
  %v121 = vunpack.c.l.b16 %v89
  %v122 = vunpack.c.l.b16 %v90
  %v123 = vunpack.c.l.b16 %v91
  %v124 = vpack.c.b16 %v109, %v108
  %v125 = vpack.c.b16 %v111, %v110
  %v126 = vpack.c.b16 %v113, %v112
  %v127 = vpack.c.b16 %v115, %v114
  %v128 = vpack.c.b16 %v117, %v116
  %v129 = vpack.c.b16 %v119, %v118
  %v130 = vpack.c.b16 %v121, %v120
  %v131 = vpack.c.b16 %v123, %v122
  %v156 = vunpack.c.l.b16 %v44
  %v157 = vunpack.c.l.b16 %v45
  %v158 = vunpack.c.l.b16 %v46
  %v159 = vunpack.c.l.b16 %v47
  %v160 = vunpack.c.l.b16 %v48
  %v161 = vunpack.c.l.b16 %v49
  %v162 = vunpack.c.l.b16 %v50
  %v163 = vunpack.c.l.b16 %v51
  %v164 = vunpack.c.l.b16 %v52
  %v165 = vunpack.c.l.b16 %v53
  %v166 = vunpack.c.l.b16 %v54
  %v167 = vunpack.c.l.b16 %v55
  %v168 = vunpack.c.l.b16 %v56
  %v169 = vunpack.c.l.b16 %v57
  %v170 = vunpack.c.l.b16 %v58
  %v171 = vunpack.c.l.b16 %v59
  %v172 = vpack.c.b16 %v157, %v156
  %v173 = vpack.c.b16 %v159, %v158
  %v174 = vpack.c.b16 %v161, %v160
  %v175 = vpack.c.b16 %v163, %v162
  %v176 = vpack.c.b16 %v165, %v164
  %v177 = vpack.c.b16 %v167, %v166
  %v178 = vpack.c.b16 %v169, %v168
  %v179 = vpack.c.b16 %v171, %v170
  %188 = vmatprep.subr.bf16.mxu0 0
  %189 = vmatpush1.bf16.msra.mxu0 %v172
  %190 = vmatprep.subr.bf16.mxu0 0
  %191 = vmatpush1.bf16.msra.mxu0 %v173
  %192 = vmatprep.subr.bf16.mxu0 0
  %193 = vmatpush1.bf16.msra.mxu0 %v174
  %194 = vmatprep.subr.bf16.mxu0 0
  %195 = vmatpush1.bf16.msra.mxu0 %v175
  %196 = vmatprep.subr.bf16.mxu0 0
  %197 = vmatpush1.bf16.msra.mxu0 %v176
  %198 = vmatprep.subr.bf16.mxu0 0
  %199 = vmatpush1.bf16.msra.mxu0 %v177
  %200 = vmatprep.subr.bf16.mxu0 0
  %201 = vmatpush1.bf16.msra.mxu0 %v178
  %202 = vmatprep.subr.bf16.mxu0 0
  %203 = vmatpush1.bf16.msra.mxu0 %v179
  %204 = vmatprep.subr.bf16.mxu0 0
  %205 = vmatpush1.bf16.msra.mxu0 0
  %206 = vmatprep.subr.bf16.mxu0 0
  %207 = vmatpush1.bf16.msra.mxu0 0
  %208 = vmatprep.subr.bf16.mxu0 0
  %209 = vmatpush1.bf16.msra.mxu0 0
  %210 = vmatprep.subr.bf16.mxu0 0
  %211 = vmatpush1.bf16.msra.mxu0 0
  %212 = vmatprep.subr.bf16.mxu0 0
  %213 = vmatpush1.bf16.msra.mxu0 0
  %214 = vmatprep.subr.bf16.mxu0 0
  %215 = vmatpush1.bf16.msra.mxu0 0
  %216 = vmatprep.subr.bf16.mxu0 0
  %217 = vmatpush1.bf16.msra.mxu0 0
  %218 = vmatprep.subr.bf16.mxu0 0
  %219 = vmatpush1.bf16.msra.mxu0 0
  %220 = vmatprep.mubr.bf16.mxu0 0
  %221 = vmatmul.mubr.bf16.gmra.mrb[0].mxu0 %v124
  %v222 = vpop.f32.mrb[0].mxu0
  %v223 = vadd.f32 0.0, %v222
  %v224 = vpop.f32.mrb[0].mxu0
  %v225 = vpop.f32.mrb[0].mxu0
  %v226 = vadd.f32 0.0, %v225
  %v227 = vpop.f32.mrb[0].mxu0
  %228 = vmatprep.mubr.bf16.mxu0 0
  %229 = vmatmul.mubr.bf16.gmra.mrb[0].mxu0 %v125
  %v230 = vpop.f32.mrb[0].mxu0
  %v231 = vadd.f32 0.0, %v230
  %v232 = vpop.f32.mrb[0].mxu0
  %v233 = vpop.f32.mrb[0].mxu0
  %v234 = vadd.f32 0.0, %v233
  %v235 = vpop.f32.mrb[0].mxu0
  %236 = vmatprep.mubr.bf16.mxu0 0
  %237 = vmatmul.mubr.bf16.gmra.mrb[0].mxu0 %v126
  %v238 = vpop.f32.mrb[0].mxu0
  %v239 = vadd.f32 0.0, %v238
  %v240 = vpop.f32.mrb[0].mxu0
  %v241 = vpop.f32.mrb[0].mxu0
  %v242 = vadd.f32 0.0, %v241
  %v243 = vpop.f32.mrb[0].mxu0
  %244 = vmatprep.mubr.bf16.mxu0 0
  %245 = vmatmul.mubr.bf16.gmra.mrb[0].mxu0 %v127
  %v246 = vpop.f32.mrb[0].mxu0
  %v247 = vadd.f32 0.0, %v246
  %v248 = vpop.f32.mrb[0].mxu0
  %v249 = vpop.f32.mrb[0].mxu0
  %v250 = vadd.f32 0.0, %v249
  %v251 = vpop.f32.mrb[0].mxu0
  %252 = vmatprep.mubr.bf16.mxu0 0
  %253 = vmatmul.mubr.bf16.gmra.mrb[0].mxu0 %v128
  %v254 = vpop.f32.mrb[0].mxu0
  %v255 = vadd.f32 0.0, %v254
  %v256 = vpop.f32.mrb[0].mxu0
  %v257 = vpop.f32.mrb[0].mxu0
  %v258 = vadd.f32 0.0, %v257
  %v259 = vpop.f32.mrb[0].mxu0
  %260 = vmatprep.mubr.bf16.mxu0 0
  %261 = vmatmul.mubr.bf16.gmra.mrb[0].mxu0 %v129
  %v262 = vpop.f32.mrb[0].mxu0
  %v263 = vadd.f32 0.0, %v262
  %v264 = vpop.f32.mrb[0].mxu0
  %v265 = vpop.f32.mrb[0].mxu0
  %v266 = vadd.f32 0.0, %v265
  %v267 = vpop.f32.mrb[0].mxu0
  %268 = vmatprep.mubr.bf16.mxu0 0
  %269 = vmatmul.mubr.bf16.gmra.mrb[0].mxu0 %v130
  %v270 = vpop.f32.mrb[0].mxu0
  %v271 = vadd.f32 0.0, %v270
  %v272 = vpop.f32.mrb[0].mxu0
  %v273 = vpop.f32.mrb[0].mxu0
  %v274 = vadd.f32 0.0, %v273
  %v275 = vpop.f32.mrb[0].mxu0
  %276 = vmatprep.mubr.bf16.mxu0 0
  %277 = vmatmul.mubr.bf16.gmra.mrb[0].mxu0 %v131
  %v278 = vpop.f32.mrb[0].mxu0
  %v279 = vadd.f32 0.0, %v278
  %v280 = vpop.f32.mrb[0].mxu0
  %v281 = vpop.f32.mrb[0].mxu0
  %v282 = vadd.f32 0.0, %v281
  %v283 = vpop.f32.mrb[0].mxu0
  %284 = vdwg.mxu0
  %v285 = vadd.f32 %v60, %v223
  %v286 = vadd.f32 %v61, %v226
  %v287 = vadd.f32 %v62, %v231
  %v288 = vadd.f32 %v63, %v234
  %v289 = vadd.f32 %v64, %v239
  %v290 = vadd.f32 %v65, %v242
  %v291 = vadd.f32 %v66, %v247
  %v292 = vadd.f32 %v67, %v250
  %v293 = vadd.f32 %v68, %v255
  %v294 = vadd.f32 %v69, %v258
  %v295 = vadd.f32 %v70, %v263
  %v296 = vadd.f32 %v71, %v266
  %v297 = vadd.f32 %v72, %v271
  %v298 = vadd.f32 %v73, %v274
  %v299 = vadd.f32 %v74, %v279
  %v300 = vadd.f32 %v75, %v282
  %vm301 = vcmask 64512
  %302 = vst.msk [vmem:[#allocation2] sm:$0xff] %vm301, %v285
  %303 = vst.msk [vmem:[#allocation2 + $0x8] sm:$0xff] %vm301, %v286
  %304 = vst.msk [vmem:[#allocation2 + $0x10] sm:$0xff] %vm301, %v287
  %305 = vst.msk [vmem:[#allocation2 + $0x18] sm:$0xff] %vm301, %v288
  %306 = vst.msk [vmem:[#allocation2 + $0x20] sm:$0xff] %vm301, %v289
  %307 = vst.msk [vmem:[#allocation2 + $0x28] sm:$0xff] %vm301, %v290
  %308 = vst.msk [vmem:[#allocation2 + $0x30] sm:$0xff] %vm301, %v291
  %309 = vst.msk [vmem:[#allocation2 + $0x38] sm:$0xff] %vm301, %v292
  %310 = vst.msk [vmem:[#allocation2 + $0x40] sm:$0xff] %vm301, %v293
  %311 = vst.msk [vmem:[#allocation2 + $0x48] sm:$0xff] %vm301, %v294
  %312 = vst.msk [vmem:[#allocation2 + $0x50] sm:$0xff] %vm301, %v295
  %313 = vst.msk [vmem:[#allocation2 + $0x58] sm:$0xff] %vm301, %v296
  %314 = vst.msk [vmem:[#allocation2 + $0x60] sm:$0xff] %vm301, %v297
  %315 = vst.msk [vmem:[#allocation2 + $0x68] sm:$0xff] %vm301, %v298
  %316 = vst.msk [vmem:[#allocation2 + $0x70] sm:$0xff] %vm301, %v299
  %317 = vst.msk [vmem:[#allocation2 + $0x78] sm:$0xff] %vm301, %v300
  // Predicated region
  $region22: #{gcn_forward.2} parent=0 // pred_check
    %p318 = pneg %p18
  $region23: #{gcn_forward.2} parent=0 // pred_check_branch
    %320 = sbr.rel (%p318) target = $region25
  $region24: #{gcn_forward.2} parent=0 // pred_region
    %v321 = vld [vmem:[#allocation2] sm:$0xff]
    %v322 = vld [vmem:[#allocation2 + $0x8] sm:$0xff]
    %v323 = vld [vmem:[#allocation2 + $0x10] sm:$0xff]
    %v324 = vld [vmem:[#allocation2 + $0x18] sm:$0xff]
    %v325 = vld [vmem:[#allocation2 + $0x20] sm:$0xff]
    %v326 = vld [vmem:[#allocation2 + $0x28] sm:$0xff]
    %v327 = vld [vmem:[#allocation2 + $0x30] sm:$0xff]
    %v328 = vld [vmem:[#allocation2 + $0x38] sm:$0xff]
    %v329 = vld [vmem:[#allocation2 + $0x40] sm:$0xff]
    %v330 = vld [vmem:[#allocation2 + $0x48] sm:$0xff]
    %v331 = vld [vmem:[#allocation2 + $0x50] sm:$0xff]
    %v332 = vld [vmem:[#allocation2 + $0x58] sm:$0xff]
    %v333 = vld [vmem:[#allocation2 + $0x60] sm:$0xff]
    %v334 = vld [vmem:[#allocation2 + $0x68] sm:$0xff]
    %v335 = vld [vmem:[#allocation2 + $0x70] sm:$0xff]
    %v336 = vld [vmem:[#allocation2 + $0x78] sm:$0xff]
    %v337 = vld [vmem:[%s2] sm:$0xff]
    %v338 = vld [vmem:[%s3] sm:$0x1]
    %v340 = vlaneseq
    %v341 = vshrl.u32 %v340, 7
    %v342 = vsub.s32 0, %v341
    %v343 = vrot.slane %v338, %v342
    %v346 = vsel %vm301, %v321, 0
    %v349 = vsel %vm301, %v322, 0
    %v352 = vsel %vm301, %v323, 0
    %v355 = vsel %vm301, %v324, 0
    %v358 = vsel %vm301, %v325, 0
    %v361 = vsel %vm301, %v326, 0
    %v364 = vsel %vm301, %v327, 0
    %v367 = vsel %vm301, %v328, 0
    %v370 = vsel %vm301, %v329, 0
    %v373 = vsel %vm301, %v330, 0
    %v376 = vsel %vm301, %v331, 0
    %v379 = vsel %vm301, %v332, 0
    %v382 = vsel %vm301, %v333, 0
    %v385 = vsel %vm301, %v334, 0
    %v388 = vsel %vm301, %v335, 0
    %v391 = vsel %vm301, %v336, 0
    %393 = vmatprep.subr.mxu0 0.0
    %394 = vmatpush1.msra.mxu0 %v337
    %395 = vmatprep.subr.mxu0 0.0
    %396 = vmatpush1.msra.mxu0 0.0
    %397 = vmatprep.subr.mxu0 0.0
    %398 = vmatpush1.msra.mxu0 0.0
    %399 = vmatprep.subr.mxu0 0.0
    %400 = vmatpush1.msra.mxu0 0.0
    %401 = vmatprep.subr.mxu0 0.0
    %402 = vmatpush1.msra.mxu0 0.0
    %403 = vmatprep.subr.mxu0 0.0
    %404 = vmatpush1.msra.mxu0 0.0
    %405 = vmatprep.subr.mxu0 0.0
    %406 = vmatpush1.msra.mxu0 0.0
    %407 = vmatprep.subr.mxu0 0.0
    %408 = vmatpush1.msra.mxu0 0.0
    %409 = vmatprep.subr.mxu0 0.0
    %410 = vmatpush1.msra.mxu0 0.0
    %411 = vmatprep.subr.mxu0 0.0
    %412 = vmatpush1.msra.mxu0 0.0
    %413 = vmatprep.subr.mxu0 0.0
    %414 = vmatpush1.msra.mxu0 0.0
    %415 = vmatprep.subr.mxu0 0.0
    %416 = vmatpush1.msra.mxu0 0.0
    %417 = vmatprep.subr.mxu0 0.0
    %418 = vmatpush1.msra.mxu0 0.0
    %419 = vmatprep.subr.mxu0 0.0
    %420 = vmatpush1.msra.mxu0 0.0
    %421 = vmatprep.subr.mxu0 0.0
    %422 = vmatpush1.msra.mxu0 0.0
    %423 = vmatprep.subr.mxu0 0.0
    %424 = vmatpush1.msra.mxu0 0.0
    %425 = vmatprep.subr.mxu0 0.0
    %426 = vmatpush1.msra.mxu0 0.0
    %427 = vmatprep.subr.mxu0 0.0
    %428 = vmatpush1.msra.mxu0 0.0
    %429 = vmatprep.subr.mxu0 0.0
    %430 = vmatpush1.msra.mxu0 0.0
    %431 = vmatprep.subr.mxu0 0.0
    %432 = vmatpush1.msra.mxu0 0.0
    %433 = vmatprep.subr.mxu0 0.0
    %434 = vmatpush1.msra.mxu0 0.0
    %435 = vmatprep.subr.mxu0 0.0
    %436 = vmatpush1.msra.mxu0 0.0
    %437 = vmatprep.subr.mxu0 0.0
    %438 = vmatpush1.msra.mxu0 0.0
    %439 = vmatprep.subr.mxu0 0.0
    %440 = vmatpush1.msra.mxu0 0.0
    %441 = vmatprep.subr.mxu0 0.0
    %442 = vmatpush1.msra.mxu0 0.0
    %443 = vmatprep.subr.mxu0 0.0
    %444 = vmatpush1.msra.mxu0 0.0
    %445 = vmatprep.subr.mxu0 0.0
    %446 = vmatpush1.msra.mxu0 0.0
    %447 = vmatprep.subr.mxu0 0.0
    %448 = vmatpush1.msra.mxu0 0.0
    %449 = vmatprep.subr.mxu0 0.0
    %450 = vmatpush1.msra.mxu0 0.0
    %451 = vmatprep.subr.mxu0 0.0
    %452 = vmatpush1.msra.mxu0 0.0
    %453 = vmatprep.subr.mxu0 0.0
    %454 = vmatpush1.msra.mxu0 0.0
    %455 = vmatprep.subr.mxu0 0.0
    %456 = vmatpush1.msra.mxu0 0.0
    %457 = vmatprep.mubr.f32.mxu0 0.0
    %458 = vmatmul.mubr.f32.gmra.mrb[0].mxu0 %v346
    %v459 = vpop.f32.mrb[0].mxu0
    %v460 = vadd.f32 %v343, %v459
    %v461 = vpop.f32.mrb[0].mxu0
    %462 = vmatprep.mubr.f32.mxu0 0.0
    %463 = vmatmul.mubr.f32.gmra.mrb[0].mxu0 %v349
    %v464 = vpop.f32.mrb[0].mxu0
    %v465 = vadd.f32 %v343, %v464
    %v466 = vpop.f32.mrb[0].mxu0
    %467 = vmatprep.mubr.f32.mxu0 0.0
    %468 = vmatmul.mubr.f32.gmra.mrb[0].mxu0 %v352
    %v469 = vpop.f32.mrb[0].mxu0
    %v470 = vadd.f32 %v343, %v469
    %v471 = vpop.f32.mrb[0].mxu0
    %472 = vmatprep.mubr.f32.mxu0 0.0
    %473 = vmatmul.mubr.f32.gmra.mrb[0].mxu0 %v355
    %v474 = vpop.f32.mrb[0].mxu0
    %v475 = vadd.f32 %v343, %v474
    %v476 = vpop.f32.mrb[0].mxu0
    %477 = vmatprep.mubr.f32.mxu0 0.0
    %478 = vmatmul.mubr.f32.gmra.mrb[0].mxu0 %v358
    %v479 = vpop.f32.mrb[0].mxu0
    %v480 = vadd.f32 %v343, %v479
    %v481 = vpop.f32.mrb[0].mxu0
    %482 = vmatprep.mubr.f32.mxu0 0.0
    %483 = vmatmul.mubr.f32.gmra.mrb[0].mxu0 %v361
    %v484 = vpop.f32.mrb[0].mxu0
    %v485 = vadd.f32 %v343, %v484
    %v486 = vpop.f32.mrb[0].mxu0
    %487 = vmatprep.mubr.f32.mxu0 0.0
    %488 = vmatmul.mubr.f32.gmra.mrb[0].mxu0 %v364
    %v489 = vpop.f32.mrb[0].mxu0
    %v490 = vadd.f32 %v343, %v489
    %v491 = vpop.f32.mrb[0].mxu0
    %492 = vmatprep.mubr.f32.mxu0 0.0
    %493 = vmatmul.mubr.f32.gmra.mrb[0].mxu0 %v367
    %v494 = vpop.f32.mrb[0].mxu0
    %v495 = vadd.f32 %v343, %v494
    %v496 = vpop.f32.mrb[0].mxu0
    %497 = vmatprep.mubr.f32.mxu0 0.0
    %498 = vmatmul.mubr.f32.gmra.mrb[0].mxu0 %v370
    %v499 = vpop.f32.mrb[0].mxu0
    %v500 = vadd.f32 %v343, %v499
    %v501 = vpop.f32.mrb[0].mxu0
    %502 = vmatprep.mubr.f32.mxu0 0.0
    %503 = vmatmul.mubr.f32.gmra.mrb[0].mxu0 %v373
    %v504 = vpop.f32.mrb[0].mxu0
    %v505 = vadd.f32 %v343, %v504
    %v506 = vpop.f32.mrb[0].mxu0
    %507 = vmatprep.mubr.f32.mxu0 0.0
    %508 = vmatmul.mubr.f32.gmra.mrb[0].mxu0 %v376
    %v509 = vpop.f32.mrb[0].mxu0
    %v510 = vadd.f32 %v343, %v509
    %v511 = vpop.f32.mrb[0].mxu0
    %512 = vmatprep.mubr.f32.mxu0 0.0
    %513 = vmatmul.mubr.f32.gmra.mrb[0].mxu0 %v379
    %v514 = vpop.f32.mrb[0].mxu0
    %v515 = vadd.f32 %v343, %v514
    %v516 = vpop.f32.mrb[0].mxu0
    %517 = vmatprep.mubr.f32.mxu0 0.0
    %518 = vmatmul.mubr.f32.gmra.mrb[0].mxu0 %v382
    %v519 = vpop.f32.mrb[0].mxu0
    %v520 = vadd.f32 %v343, %v519
    %v521 = vpop.f32.mrb[0].mxu0
    %522 = vmatprep.mubr.f32.mxu0 0.0
    %523 = vmatmul.mubr.f32.gmra.mrb[0].mxu0 %v385
    %v524 = vpop.f32.mrb[0].mxu0
    %v525 = vadd.f32 %v343, %v524
    %v526 = vpop.f32.mrb[0].mxu0
    %527 = vmatprep.mubr.f32.mxu0 0.0
    %528 = vmatmul.mubr.f32.gmra.mrb[0].mxu0 %v388
    %v529 = vpop.f32.mrb[0].mxu0
    %v530 = vadd.f32 %v343, %v529
    %v531 = vpop.f32.mrb[0].mxu0
    %532 = vmatprep.mubr.f32.mxu0 0.0
    %533 = vmatmul.mubr.f32.gmra.mrb[0].mxu0 %v391
    %v534 = vpop.f32.mrb[0].mxu0
    %v535 = vadd.f32 %v343, %v534
    %v536 = vpop.f32.mrb[0].mxu0
    %537 = vdwg.mxu0
    %v538 = vmax.f32 %v460, 0.0
    %v539 = vmax.f32 %v465, 0.0
    %v540 = vmax.f32 %v470, 0.0
    %v541 = vmax.f32 %v475, 0.0
    %v542 = vmax.f32 %v480, 0.0
    %v543 = vmax.f32 %v485, 0.0
    %v544 = vmax.f32 %v490, 0.0
    %v545 = vmax.f32 %v495, 0.0
    %v546 = vmax.f32 %v500, 0.0
    %v547 = vmax.f32 %v505, 0.0
    %v548 = vmax.f32 %v510, 0.0
    %v549 = vmax.f32 %v515, 0.0
    %v550 = vmax.f32 %v520, 0.0
    %v551 = vmax.f32 %v525, 0.0
    %v552 = vmax.f32 %v530, 0.0
    %v553 = vmax.f32 %v535, 0.0
    %v554 = vpack.c.bf16 %v539, %v538
    %v555 = vpack.c.bf16 %v541, %v540
    %v556 = vpack.c.bf16 %v543, %v542
    %v557 = vpack.c.bf16 %v545, %v544
    %v558 = vpack.c.bf16 %v547, %v546
    %v559 = vpack.c.bf16 %v549, %v548
    %v560 = vpack.c.bf16 %v551, %v550
    %v561 = vpack.c.bf16 %v553, %v552
    %v570 = vunpack.c.l.b16 %v554
    %v571 = vunpack.c.h.b16 %v554
    %v572 = vunpack.c.l.b16 %v555
    %v573 = vunpack.c.h.b16 %v555
    %v574 = vunpack.c.l.b16 %v556
    %v575 = vunpack.c.h.b16 %v556
    %v576 = vunpack.c.l.b16 %v557
    %v577 = vunpack.c.h.b16 %v557
    %v578 = vunpack.c.l.b16 %v558
    %v579 = vunpack.c.h.b16 %v558
    %v580 = vunpack.c.l.b16 %v559
    %v581 = vunpack.c.h.b16 %v559
    %v582 = vunpack.c.l.b16 %v560
    %v583 = vunpack.c.h.b16 %v560
    %v584 = vunpack.c.l.b16 %v561
    %v585 = vunpack.c.h.b16 %v561
    %v586 = vpack.c.b16 %v570, %v570
    %v587 = vpack.c.b16 %v571, %v571
    %v588 = vpack.c.b16 %v572, %v572
    %v589 = vpack.c.b16 %v573, %v573
    %v590 = vpack.c.b16 %v574, %v574
    %v591 = vpack.c.b16 %v575, %v575
    %v592 = vpack.c.b16 %v576, %v576
    %v593 = vpack.c.b16 %v577, %v577
    %v594 = vpack.c.b16 %v578, %v578
    %v595 = vpack.c.b16 %v579, %v579
    %v596 = vpack.c.b16 %v580, %v580
    %v597 = vpack.c.b16 %v581, %v581
    %v598 = vpack.c.b16 %v582, %v582
    %v599 = vpack.c.b16 %v583, %v583
    %v600 = vpack.c.b16 %v584, %v584
    %v601 = vpack.c.b16 %v585, %v585
    %vm618 = vcmask 125952
    %619 = vst.msk [vmem:[%s4] sm:$0xf] %vm618, %v586
    %620 = vst.msk [vmem:[%s4 + $0x4] sm:$0xf] %vm618, %v587
    %621 = vst.msk [vmem:[%s4 + $0x8] sm:$0xf] %vm618, %v588
    %622 = vst.msk [vmem:[%s4 + $0xc] sm:$0xf] %vm618, %v589
    %623 = vst.msk [vmem:[%s4 + $0x10] sm:$0xf] %vm618, %v590
    %624 = vst.msk [vmem:[%s4 + $0x14] sm:$0xf] %vm618, %v591
    %625 = vst.msk [vmem:[%s4 + $0x18] sm:$0xf] %vm618, %v592
    %626 = vst.msk [vmem:[%s4 + $0x1c] sm:$0xf] %vm618, %v593
    %627 = vst.msk [vmem:[%s4 + $0x20] sm:$0xf] %vm618, %v594
    %628 = vst.msk [vmem:[%s4 + $0x24] sm:$0xf] %vm618, %v595
    %629 = vst.msk [vmem:[%s4 + $0x28] sm:$0xf] %vm618, %v596
    %630 = vst.msk [vmem:[%s4 + $0x2c] sm:$0xf] %vm618, %v597
    %631 = vst.msk [vmem:[%s4 + $0x30] sm:$0xf] %vm618, %v598
    %632 = vst.msk [vmem:[%s4 + $0x34] sm:$0xf] %vm618, %v599
    %633 = vst.msk [vmem:[%s4 + $0x38] sm:$0xf] %vm618, %v600
    %634 = vst.msk [vmem:[%s4 + $0x3c] sm:$0xf] %vm618, %v601
  $region25: #{gcn_forward.2} parent=0 // pred_fallthru
    _
  // Predicated region
  $region26: #{gcn_forward.2} parent=0 // pred_check
    _
  $region27: #{gcn_forward.2} parent=0 // pred_check_branch
    %636 = sbr.rel (0) target = $region29
  $region28: #{gcn_forward.2} parent=0 // pred_region
    _
  $region29: #{gcn_forward.2} parent=0 // pred_fallthru
    _
  // Predicated region
  $region30: #{gcn_forward.2} parent=0 // pred_check
    _
  $region31: #{gcn_forward.2} parent=0 // pred_check_branch
    %638 = sbr.rel (0) target = $region33
  $region32: #{gcn_forward.2} parent=0 // pred_region
    _
  $region33: #{gcn_forward.2} parent=0 // pred_fallthru
    _

</llo_original>
